<compile_context>
chip_gen: v7x
topology: tpu7x:2x2x1
jax: 0.10.0
libtpu: 0.0.40
codegen_flags: <defaults>
</compile_context>

<pallas_src>
import numpy as np
import jax
import jax.numpy as jnp
from jax import lax
from jax.experimental import pallas as pl
from jax.experimental.pallas import tpu as pltpu


# Fixed architecture constants (from the PyTorch module).
_C0 = 3                       # input channels
_C1 = 16                      # conv1 out channels
_C2 = 4                       # conv2 out channels
_CT1 = 16                     # t_conv1 out channels
_CT2 = 32                     # t_conv2 out channels
_NHEAD = 4                    # pos / cos / sin / width
_PATCH = 6 * 6 * _C0          # 108  : 6x6x3 input patch per pooled cell
_KPAD = 128                   # lane-aligned K for the conv1 matmul
_BLK1 = 4 * 4 * _C1           # 256  : conv1 4x4 block, channels (u, v, c)
_BLK2 = 2 * 2 * _C2           # 16   : conv2 2x2 block, channels (a, b, c)
_TC1 = 4 * _CT1               # 64   : (di, dj, c)
_TC2 = 16 * _CT2              # 512  : (di, dj, ei, ej, c)
_OUT = 4 * _NHEAD             # 16   : (di, dj, head)
_SMALL_ROWS = 16              # consolidated bias / wt1 / mask buffer rows
_SMALL_COLS = 512


# ----------------------------------------------------------------------------
# The fused Pallas kernel: whole network for one tile of pooled-cell rows.
#   p_ref   : [T, 128]  bf16   (108 patch lanes | 4 edge flags | 16 zero lanes)
#   w1_ref  : [128, 256] bf16  conv1 block matrix (zero rows for lanes >= 108)
#   w2_ref  : [256, 16]  bf16  conv2 block matrix
#   wt2_ref : [64, 512]  bf16  t_conv2 block-diag matrix
#   wh_ref  : [512, 16]  bf16  heads block-diag matrix
#   sm_ref  : [16, 512]  f32   row0=bt2, row1=b1, row2=b2, row3=bhd, row4=bt1,
#                              rows8..11=wt1 (4x64), rows12..15=border masks
# ----------------------------------------------------------------------------
def _ggcnn_fused_kernel(p_ref, w1_ref, w2_ref, wt2_ref, wh_ref, sm_ref, o_ref):
    x = p_ref[...]                                               # [T, 128] bf16

    # conv1 + bias + ReLU over the 4x4 conv1 block of each pooled cell.
    y1 = jnp.dot(x, w1_ref[...], preferred_element_type=jnp.float32)   # [T,256]
    y1 = jnp.maximum(y1 + sm_ref[1:2, 0:_BLK1], 0.0)

    # Reproduce conv2's zero padding: zero the block lanes that fall outside
    # the image (edge flags live in lanes 108..111; masks are precomputed).
    ef = x[:, _PATCH:_PATCH + 4].astype(jnp.float32)             # [T, 4]
    badf = (ef[:, 0:1] * sm_ref[12:13, 0:_BLK1] +                # top    -> u==0
            ef[:, 1:2] * sm_ref[13:14, 0:_BLK1] +                # bottom -> u==3
            ef[:, 2:3] * sm_ref[14:15, 0:_BLK1] +                # left   -> v==0
            ef[:, 3:4] * sm_ref[15:16, 0:_BLK1])                 # right  -> v==3
    y1 = jnp.where(badf > 0.0, 0.0, y1)

    # conv2 + bias + ReLU -> 2x2x4 block, channels (a, b, c).
    y2 = jnp.dot(y1.astype(jnp.bfloat16), w2_ref[...],
                 preferred_element_type=jnp.float32)
    y2 = jnp.maximum(y2 + sm_ref[2:3, 0:_BLK2], 0.0)             # [T, 16]

    # MaxPool2d(2, 2) == max over the four (a, b) lane groups.
    pooled = jnp.maximum(jnp.maximum(y2[:, 0:_C2], y2[:, _C2:2 * _C2]),
                         jnp.maximum(y2[:, 2 * _C2:3 * _C2],
                                     y2[:, 3 * _C2:4 * _C2]))    # [T, 4]

    # t_conv1 + ReLU (K=4): done with 4 broadcast FMAs on the VPU — an MXU
    # matmul would burn a full-T push for ~0.2% of the FLOPs.
    t1 = sm_ref[4:5, 0:_TC1]                                     # bias [1, 64]
    for c in range(_C2):
        t1 = t1 + pooled[:, c:c + 1] * sm_ref[8 + c:9 + c, 0:_TC1]
    t1 = jnp.maximum(t1, 0.0)                                    # [T, 64]

    # t_conv2 + ReLU (block-diagonal over (di, dj)) -> (di, dj, ei, ej, c).
    t2 = jnp.dot(t1.astype(jnp.bfloat16), wt2_ref[...],
                 preferred_element_type=jnp.float32)
    t2 = jnp.maximum(t2 + sm_ref[0:1, :], 0.0)                   # [T, 512]

    # 4 heads (block-diagonal over (di, dj)) -> (di, dj, head).
    o = jnp.dot(t2.astype(jnp.bfloat16), wh_ref[...],
                preferred_element_type=jnp.float32)
    o_ref[...] = (o + sm_ref[3:4, 0:_OUT]).astype(o_ref.dtype)   # [T, 16]


# ----------------------------------------------------------------------------
# Weight packing (tiny, done at trace time).
# ----------------------------------------------------------------------------
def _conv_block_matrix(w, in_hw, out_hw):
    """Dense matrix for a 3x3 'same' conv evaluated on an out_hw x out_hw block
    whose receptive field is an in_hw x in_hw patch.
    w: [Cout, Cin, 3, 3] (PyTorch OIHW) ->
    [in_hw*in_hw*Cin, out_hw*out_hw*Cout], channel-fastest on both sides."""
    cout, cin, kh, kw = w.shape
    wk = jnp.transpose(w, (2, 3, 1, 0))                          # [kh,kw,Cin,Cout]
    m = jnp.zeros((in_hw, in_hw, cin, out_hw, out_hw, cout), w.dtype)
    for u in range(out_hw):
        for v in range(out_hw):
            m = m.at[u:u + kh, v:v + kw, :, u, v, :].set(wk)
    return m.reshape(in_hw * in_hw * cin, out_hw * out_hw * cout)


def _block_diag4(w):
    """Block-diagonal expansion over the 4 (di, dj) sub-pixel groups."""
    cin, cout = w.shape
    m = jnp.zeros((4, cin, 4, cout), w.dtype)
    for k in range(4):
        m = m.at[k, :, k, :].set(w)
    return m.reshape(4 * cin, 4 * cout)


def _pack_small(b1e, b2e, bt1, bt2, bhd, wt1):
    """One (16, 512) f32 buffer holding all biases, wt1 and the border masks."""
    sm = jnp.zeros((_SMALL_ROWS, _SMALL_COLS), jnp.float32)
    sm = sm.at[0, :_TC2].set(bt2)
    sm = sm.at[1, :_BLK1].set(b1e)
    sm = sm.at[2, :_BLK2].set(b2e)
    sm = sm.at[3, :_OUT].set(bhd)
    sm = sm.at[4, :_TC1].set(bt1)
    sm = sm.at[8:12, :_TC1].set(wt1)
    # Border masks over the conv1 block lanes, ordering (u, v, c), c fastest.
    lane = np.arange(_BLK1)
    u = lane // (4 * _C1)
    v = (lane // _C1) % 4
    masks = np.stack([(u == 0), (u == 3), (v == 0), (v == 3)]).astype(np.float32)
    sm = sm.at[12:16, :_BLK1].set(jnp.asarray(masks))
    return sm


def _pick_tile(m_rows, max_tile=2048):
    """Largest row tile <= max_tile that yields >= 2 grid steps; step count is
    forced EVEN so v7x's two TensorCores split the 'parallel' axis evenly."""
    t = max_tile
    while t > 64 and pl.cdiv(m_rows, t) < 2:
        t //= 2
    steps = max(pl.cdiv(m_rows, t), 2)
    if steps % 2:
        steps += 1
    return t, steps


# ----------------------------------------------------------------------------
# Forward pass wrapper.
# ----------------------------------------------------------------------------
def auto_ggcnn_forward(params, x_nchw):
    """Input NCHW [N,3,H,W]; returns 4 x NCHW [N,1,H,W] (pos, cos, sin, width)."""
    x = jnp.transpose(x_nchw, (0, 2, 3, 1)).astype(jnp.bfloat16)     # NHWC bf16
    n, h, w, c0 = x.shape
    assert c0 == _C0 and h % 2 == 0 and w % 2 == 0
    hp, wp = h // 2, w // 2
    m = n * hp * wp

    # --- XLA glue: 6x6x3 bf16 patch per pooled cell + edge flags, 128 lanes. --
    xp = jnp.pad(x, ((0, 0), (2, 2), (2, 2), (0, 0)))
    cols = [xp[:, s:s + 2 * hp:2, t:t + 2 * wp:2, :]
            for s in range(6) for t in range(6)]
    patches = jnp.concatenate(cols, axis=-1).reshape(m, _PATCH)       # bf16

    i_idx = lax.broadcasted_iota(jnp.int32, (hp, wp), 0)
    j_idx = lax.broadcasted_iota(jnp.int32, (hp, wp), 1)
    ef = jnp.stack([i_idx == 0, i_idx == hp - 1,
                    j_idx == 0, j_idx == wp - 1], axis=-1).astype(jnp.bfloat16)
    ef = jnp.broadcast_to(ef[None], (n, hp, wp, 4)).reshape(m, 4)

    lane_pad = jnp.zeros((m, _KPAD - _PATCH - 4), jnp.bfloat16)
    patches128 = jnp.concatenate([patches, ef, lane_pad], axis=-1)    # [m, 128]

    # --- pack weights into matmul form (tiny; VMEM-resident, bf16 on MXU). ---
    w1e = _conv_block_matrix(params["w1"], 6, 4)                      # [108, 256]
    w1aug = jnp.zeros((_KPAD, _BLK1), jnp.float32).at[:_PATCH].set(w1e)
    w1aug = w1aug.astype(jnp.bfloat16)                                # [128, 256]
    w2e = _conv_block_matrix(params["w2"], 4, 2).astype(jnp.bfloat16) # [256, 16]
    wt1 = jnp.transpose(params["tw1"], (0, 2, 3, 1)).reshape(_C2, _TC1)         # [4,64] f32
    wt2 = _block_diag4(
        jnp.transpose(params["tw2"], (0, 2, 3, 1)).reshape(_CT1, 4 * _CT2)
    ).astype(jnp.bfloat16)                                            # [64, 512]
    whd = _block_diag4(
        jnp.transpose(params["hw"], (2, 3, 1, 0)).reshape(4 * _CT2, _NHEAD)
    ).astype(jnp.bfloat16)                                            # [512, 16]

    b1e = jnp.tile(params["b1"], 16)                                  # [256]
    b2e = jnp.tile(params["b2"], 4)                                   # [16]
    bt1 = jnp.tile(params["tb1"], 4)                                  # [64]
    bt2 = jnp.tile(params["tb2"], 16)                                 # [512]
    bhd = jnp.tile(params["hb"], 4)                                   # [16]
    smallbuf = _pack_small(b1e, b2e, bt1, bt2, bhd, wt1)              # [16, 512]

    # --- pad rows to an even number of tiles and run the fused kernel. ---
    tile, steps = _pick_tile(m)
    m_pad = tile * steps
    if m_pad != m:
        patches128 = jnp.pad(patches128, ((0, m_pad - m), (0, 0)))

    row = lambda i: (i, 0)
    full = lambda i: (0, 0)
    out = pl.pallas_call(
        _ggcnn_fused_kernel,
        out_shape=jax.ShapeDtypeStruct((m_pad, _OUT), jnp.float32),
        grid=(steps,),
        in_specs=[
            pl.BlockSpec((tile, _KPAD), row),
            pl.BlockSpec((_KPAD, _BLK1), full),
            pl.BlockSpec((_BLK1, _BLK2), full),
            pl.BlockSpec((_TC1, _TC2), full),
            pl.BlockSpec((_TC2, _OUT), full),
            pl.BlockSpec((_SMALL_ROWS, _SMALL_COLS), full),
        ],
        out_specs=pl.BlockSpec((tile, _OUT), row),
        compiler_params=pltpu.CompilerParams(
            dimension_semantics=("parallel",),
            vmem_limit_bytes=32 * 1024 * 1024),
    )(patches128, w1aug, w2e, wt2, whd, smallbuf)

    # --- output layout: (n, i, j, di, dj, head) -> NCHW, split heads. ---
    out = out[:m].reshape(n, hp, wp, 2, 2, _NHEAD)
    out = jnp.transpose(out, (0, 5, 1, 3, 2, 4)).reshape(n, _NHEAD, h, w)
    pos, cos, sin, wid = (out[:, k:k + 1] for k in range(_NHEAD))
    return pos, cos, sin, wid


# ----------------------------------------------------------------------------
# Deterministic parameter init (xavier_uniform like the PyTorch module).
# ----------------------------------------------------------------------------
def init_params(key):
    ks = jax.random.split(key, 16)

    def xavier(k, shape, fan_in, fan_out):
        bound = float(np.sqrt(6.0 / (fan_in + fan_out)))
        return jax.random.uniform(k, shape, jnp.float32, -bound, bound)

    def bias(k, nel, fan_in):
        bound = float(1.0 / np.sqrt(fan_in))
        return jax.random.uniform(k, (nel,), jnp.float32, -bound, bound)

    p = {}
    p["w1"] = xavier(ks[0], (16, 3, 3, 3), 3 * 9, 16 * 9)      # Conv2d(3,16,3)
    p["b1"] = bias(ks[1], 16, 3 * 9)
    p["w2"] = xavier(ks[2], (4, 16, 3, 3), 16 * 9, 4 * 9)      # Conv2d(16,4,3)
    p["b2"] = bias(ks[3], 4, 16 * 9)
    p["tw1"] = xavier(ks[4], (4, 16, 2, 2), 16 * 4, 4 * 4)     # ConvT(4,16,2,s2)
    p["tb1"] = bias(ks[5], 16, 4 * 4)
    p["tw2"] = xavier(ks[6], (16, 32, 2, 2), 32 * 4, 16 * 4)   # ConvT(16,32,2,s2)
    p["tb2"] = bias(ks[7], 32, 16 * 4)
    hw = [xavier(ks[8 + i], (1, 32, 2, 2), 32 * 4, 1 * 4) for i in range(4)]
    p["hw"] = jnp.concatenate(hw, axis=0)                      # [4,32,2,2]
    p["hb"] = bias(ks[12], 4, 32 * 4)
    return p


# ----------------------------------------------------------------------------
# Pure-JAX f32 reference (explicit PyTorch index semantics) for checking.
# ----------------------------------------------------------------------------
def ref_forward(params, x_nchw):
    x = jnp.transpose(x_nchw, (0, 2, 3, 1)).astype(jnp.float32)

    def conv3(x, w, b):
        N, H, W, _ = x.shape
        xp = jnp.pad(x, ((0, 0), (1, 1), (1, 1), (0, 0)))
        out = jnp.zeros((N, H, W, w.shape[0]), jnp.float32) + b
        for dy in range(3):
            for dx in range(3):
                out = out + jnp.einsum(
                    "nhwc,oc->nhwo", xp[:, dy:dy + H, dx:dx + W, :], w[:, :, dy, dx])
        return jnp.maximum(out, 0.0)

    def pool(x):
        N, H, W, C = x.shape
        return jnp.max(x.reshape(N, H // 2, 2, W // 2, 2, C), axis=(2, 4))

    def tconv(x, w, b):
        N, H, W, _ = x.shape
        Cout = w.shape[1]
        out = jnp.zeros((N, 2 * H, 2 * W, Cout), jnp.float32)
        for di in range(2):
            for dj in range(2):
                y = jnp.einsum("nhwi,io->nhwo", x, w[:, :, di, dj])
                out = out.at[:, di::2, dj::2, :].set(y)
        return jnp.maximum(out + b, 0.0)

    def head(x, w, b):
        N, H, W, _ = x.shape
        out = jnp.zeros((N, H // 2, W // 2), jnp.float32) + b
        for di in range(2):
            for dj in range(2):
                out = out + jnp.einsum("nhwc,c->nhw", x[:, di::2, dj::2, :], w[0, :, di, dj])
        return out[:, None, :, :]

    x = conv3(x, params["w1"], params["b1"])
    x = conv3(x, params["w2"], params["b2"])
    x = pool(x)
    x = tconv(x, params["tw1"], params["tb1"])
    x = tconv(x, params["tw2"], params["tb2"])
    return tuple(head(x, params["hw"][i:i + 1], params["hb"][i]) for i in range(4))


if __name__ == "__main__":
    key = jax.random.PRNGKey(0)
    pkey, xkey1, xkey2 = jax.random.split(key, 3)
    params = init_params(pkey)

    fwd = jax.jit(auto_ggcnn_forward)

    # bf16 MXU operands -> looser tolerance than the f32 reference.
    for shape, xkey in (((2, 3, 16, 16), xkey1), ((1, 3, 8, 12), xkey2)):
        x = jax.random.normal(xkey, shape, jnp.float32)          # NCHW, like PyTorch
        outs = jax.block_until_ready(fwd(params, x))
        refs = ref_forward(params, x)
        n, _, h, w = shape
        for o, r in zip(outs, refs):
            assert o.shape == (n, 1, h, w), o.shape
            np.testing.assert_allclose(np.asarray(o), np.asarray(r),
                                       rtol=3e-2, atol=3e-2)

    print("KERNEL_OK")
</pallas_src>

<mosaic_0001>
module attributes {stable_mosaic.version = 11 : i64} {
  func.func @_ggcnn_fused_kernel(%arg0: i32, %arg1: memref<64x128xbf16, #tpu.memory_space<vmem>>, %arg2: memref<128x256xbf16, #tpu.memory_space<vmem>>, %arg3: memref<256x16xbf16, #tpu.memory_space<vmem>>, %arg4: memref<64x512xbf16, #tpu.memory_space<vmem>>, %arg5: memref<512x16xbf16, #tpu.memory_space<vmem>>, %arg6: memref<16x512xf32, #tpu.memory_space<vmem>>, %arg7: memref<64x16xf32, #tpu.memory_space<vmem>>) attributes {dimension_semantics = [#tpu.dimension_semantics<parallel>], iteration_bounds = array<i64: 2>, scalar_prefetch = 0 : i64, scratch_operands = 0 : i64, tpu.core_type = #tpu.core_type<tc>, window_params = [{transform_indices = @transform_0, window_bounds = array<i64: 64, 128>}, {pipeline_mode = #tpu.pipeline_mode<synchronous>, transform_indices = @transform_1, window_bounds = array<i64: 128, 256>}, {pipeline_mode = #tpu.pipeline_mode<synchronous>, transform_indices = @transform_2, window_bounds = array<i64: 256, 16>}, {pipeline_mode = #tpu.pipeline_mode<synchronous>, transform_indices = @transform_3, window_bounds = array<i64: 64, 512>}, {pipeline_mode = #tpu.pipeline_mode<synchronous>, transform_indices = @transform_4, window_bounds = array<i64: 512, 16>}, {pipeline_mode = #tpu.pipeline_mode<synchronous>, transform_indices = @transform_5, window_bounds = array<i64: 16, 512>}, {transform_indices = @transform_6, window_bounds = array<i64: 64, 16>}]} {
    %c0 = arith.constant 0 : index
    %c0_0 = arith.constant 0 : index
    %0 = vector.load %arg1[%c0, %c0_0] : memref<64x128xbf16, #tpu.memory_space<vmem>>, vector<64x128xbf16>
    %c0_1 = arith.constant 0 : index
    %c0_2 = arith.constant 0 : index
    %1 = vector.load %arg2[%c0_1, %c0_2] : memref<128x256xbf16, #tpu.memory_space<vmem>>, vector<128x256xbf16>
    %cst = arith.constant dense<0.000000e+00> : vector<64x256xf32>
    %2 = tpu.matmul %0, %1, %cst {dimension_numbers = #tpu.dot_dimension_numbers<[1], [0], [0], [1], [0, 0, 1, 1], [], []>} : vector<64x128xbf16>, vector<128x256xbf16>, vector<64x256xf32> -> vector<64x256xf32>
    %c1 = arith.constant 1 : index
    %c0_3 = arith.constant 0 : index
    %3 = vector.load %arg6[%c1, %c0_3] : memref<16x512xf32, #tpu.memory_space<vmem>>, vector<1x256xf32>
    %4 = vector.broadcast %3 : vector<1x256xf32> to vector<64x256xf32>
    %5 = arith.addf %2, %4 : vector<64x256xf32>
    %cst_4 = arith.constant 0.000000e+00 : f32
    %6 = vector.broadcast %cst_4 : f32 to vector<64x256xf32>
    %7 = arith.maximumf %5, %6 : vector<64x256xf32>
    %8 = vector.extract_strided_slice %0 {offsets = [0, 108], sizes = [64, 4], strides = [1, 1]} : vector<64x128xbf16> to vector<64x4xbf16>
    %9 = arith.extf %8 : vector<64x4xbf16> to vector<64x4xf32>
    %10 = vector.extract_strided_slice %9 {offsets = [0, 0], sizes = [64, 1], strides = [1, 1]} : vector<64x4xf32> to vector<64x1xf32>
    %c12 = arith.constant 12 : index
    %c0_5 = arith.constant 0 : index
    %11 = vector.load %arg6[%c12, %c0_5] : memref<16x512xf32, #tpu.memory_space<vmem>>, vector<1x256xf32>
    %12 = vector.broadcast %10 : vector<64x1xf32> to vector<64x256xf32>
    %13 = vector.broadcast %11 : vector<1x256xf32> to vector<64x256xf32>
    %14 = arith.mulf %12, %13 : vector<64x256xf32>
    %15 = vector.extract_strided_slice %9 {offsets = [0, 1], sizes = [64, 1], strides = [1, 1]} : vector<64x4xf32> to vector<64x1xf32>
    %c13 = arith.constant 13 : index
    %c0_6 = arith.constant 0 : index
    %16 = vector.load %arg6[%c13, %c0_6] : memref<16x512xf32, #tpu.memory_space<vmem>>, vector<1x256xf32>
    %17 = vector.broadcast %15 : vector<64x1xf32> to vector<64x256xf32>
    %18 = vector.broadcast %16 : vector<1x256xf32> to vector<64x256xf32>
    %19 = arith.mulf %17, %18 : vector<64x256xf32>
    %20 = arith.addf %14, %19 : vector<64x256xf32>
    %21 = vector.extract_strided_slice %9 {offsets = [0, 2], sizes = [64, 1], strides = [1, 1]} : vector<64x4xf32> to vector<64x1xf32>
    %c14 = arith.constant 14 : index
    %c0_7 = arith.constant 0 : index
    %22 = vector.load %arg6[%c14, %c0_7] : memref<16x512xf32, #tpu.memory_space<vmem>>, vector<1x256xf32>
    %23 = vector.broadcast %21 : vector<64x1xf32> to vector<64x256xf32>
    %24 = vector.broadcast %22 : vector<1x256xf32> to vector<64x256xf32>
    %25 = arith.mulf %23, %24 : vector<64x256xf32>
    %26 = arith.addf %20, %25 : vector<64x256xf32>
    %27 = vector.extract_strided_slice %9 {offsets = [0, 3], sizes = [64, 1], strides = [1, 1]} : vector<64x4xf32> to vector<64x1xf32>
    %c15 = arith.constant 15 : index
    %c0_8 = arith.constant 0 : index
    %28 = vector.load %arg6[%c15, %c0_8] : memref<16x512xf32, #tpu.memory_space<vmem>>, vector<1x256xf32>
    %29 = vector.broadcast %27 : vector<64x1xf32> to vector<64x256xf32>
    %30 = vector.broadcast %28 : vector<1x256xf32> to vector<64x256xf32>
    %31 = arith.mulf %29, %30 : vector<64x256xf32>
    %32 = arith.addf %26, %31 : vector<64x256xf32>
    %cst_9 = arith.constant 0.000000e+00 : f32
    %33 = vector.broadcast %cst_9 : f32 to vector<64x256xf32>
    %34 = arith.cmpf ogt, %32, %33 : vector<64x256xf32>
    %cst_10 = arith.constant 0.000000e+00 : f32
    %35 = vector.broadcast %cst_10 : f32 to vector<64x256xf32>
    %36 = arith.select %34, %35, %7 : vector<64x256xi1>, vector<64x256xf32>
    %37 = arith.truncf %36 : vector<64x256xf32> to vector<64x256xbf16>
    %c0_11 = arith.constant 0 : index
    %c0_12 = arith.constant 0 : index
    %38 = vector.load %arg3[%c0_11, %c0_12] : memref<256x16xbf16, #tpu.memory_space<vmem>>, vector<256x16xbf16>
    %cst_13 = arith.constant dense<0.000000e+00> : vector<64x16xf32>
    %39 = tpu.matmul %37, %38, %cst_13 {dimension_numbers = #tpu.dot_dimension_numbers<[1], [0], [0], [1], [0, 0, 1, 1], [], []>} : vector<64x256xbf16>, vector<256x16xbf16>, vector<64x16xf32> -> vector<64x16xf32>
    %c2 = arith.constant 2 : index
    %c0_14 = arith.constant 0 : index
    %40 = vector.load %arg6[%c2, %c0_14] : memref<16x512xf32, #tpu.memory_space<vmem>>, vector<1x16xf32>
    %41 = vector.broadcast %40 : vector<1x16xf32> to vector<64x16xf32>
    %42 = arith.addf %39, %41 : vector<64x16xf32>
    %cst_15 = arith.constant 0.000000e+00 : f32
    %43 = vector.broadcast %cst_15 : f32 to vector<64x16xf32>
    %44 = arith.maximumf %42, %43 : vector<64x16xf32>
    %45 = vector.extract_strided_slice %44 {offsets = [0, 0], sizes = [64, 4], strides = [1, 1]} : vector<64x16xf32> to vector<64x4xf32>
    %46 = vector.extract_strided_slice %44 {offsets = [0, 4], sizes = [64, 4], strides = [1, 1]} : vector<64x16xf32> to vector<64x4xf32>
    %47 = arith.maximumf %45, %46 : vector<64x4xf32>
    %48 = vector.extract_strided_slice %44 {offsets = [0, 8], sizes = [64, 4], strides = [1, 1]} : vector<64x16xf32> to vector<64x4xf32>
    %49 = vector.extract_strided_slice %44 {offsets = [0, 12], sizes = [64, 4], strides = [1, 1]} : vector<64x16xf32> to vector<64x4xf32>
    %50 = arith.maximumf %48, %49 : vector<64x4xf32>
    %51 = arith.maximumf %47, %50 : vector<64x4xf32>
    %c4 = arith.constant 4 : index
    %c0_16 = arith.constant 0 : index
    %52 = vector.load %arg6[%c4, %c0_16] : memref<16x512xf32, #tpu.memory_space<vmem>>, vector<1x64xf32>
    %53 = vector.extract_strided_slice %51 {offsets = [0, 0], sizes = [64, 1], strides = [1, 1]} : vector<64x4xf32> to vector<64x1xf32>
    %c8 = arith.constant 8 : index
    %c0_17 = arith.constant 0 : index
    %54 = vector.load %arg6[%c8, %c0_17] : memref<16x512xf32, #tpu.memory_space<vmem>>, vector<1x64xf32>
    %55 = vector.broadcast %53 : vector<64x1xf32> to vector<64x64xf32>
    %56 = vector.broadcast %54 : vector<1x64xf32> to vector<64x64xf32>
    %57 = arith.mulf %55, %56 : vector<64x64xf32>
    %58 = vector.broadcast %52 : vector<1x64xf32> to vector<64x64xf32>
    %59 = arith.addf %58, %57 : vector<64x64xf32>
    %60 = vector.extract_strided_slice %51 {offsets = [0, 1], sizes = [64, 1], strides = [1, 1]} : vector<64x4xf32> to vector<64x1xf32>
    %c9 = arith.constant 9 : index
    %c0_18 = arith.constant 0 : index
    %61 = vector.load %arg6[%c9, %c0_18] : memref<16x512xf32, #tpu.memory_space<vmem>>, vector<1x64xf32>
    %62 = vector.broadcast %60 : vector<64x1xf32> to vector<64x64xf32>
    %63 = vector.broadcast %61 : vector<1x64xf32> to vector<64x64xf32>
    %64 = arith.mulf %62, %63 : vector<64x64xf32>
    %65 = arith.addf %59, %64 : vector<64x64xf32>
    %66 = vector.extract_strided_slice %51 {offsets = [0, 2], sizes = [64, 1], strides = [1, 1]} : vector<64x4xf32> to vector<64x1xf32>
    %c10 = arith.constant 10 : index
    %c0_19 = arith.constant 0 : index
    %67 = vector.load %arg6[%c10, %c0_19] : memref<16x512xf32, #tpu.memory_space<vmem>>, vector<1x64xf32>
    %68 = vector.broadcast %66 : vector<64x1xf32> to vector<64x64xf32>
    %69 = vector.broadcast %67 : vector<1x64xf32> to vector<64x64xf32>
    %70 = arith.mulf %68, %69 : vector<64x64xf32>
    %71 = arith.addf %65, %70 : vector<64x64xf32>
    %72 = vector.extract_strided_slice %51 {offsets = [0, 3], sizes = [64, 1], strides = [1, 1]} : vector<64x4xf32> to vector<64x1xf32>
    %c11 = arith.constant 11 : index
    %c0_20 = arith.constant 0 : index
    %73 = vector.load %arg6[%c11, %c0_20] : memref<16x512xf32, #tpu.memory_space<vmem>>, vector<1x64xf32>
    %74 = vector.broadcast %72 : vector<64x1xf32> to vector<64x64xf32>
    %75 = vector.broadcast %73 : vector<1x64xf32> to vector<64x64xf32>
    %76 = arith.mulf %74, %75 : vector<64x64xf32>
    %77 = arith.addf %71, %76 : vector<64x64xf32>
    %cst_21 = arith.constant 0.000000e+00 : f32
    %78 = vector.broadcast %cst_21 : f32 to vector<64x64xf32>
    %79 = arith.maximumf %77, %78 : vector<64x64xf32>
    %80 = arith.truncf %79 : vector<64x64xf32> to vector<64x64xbf16>
    %c0_22 = arith.constant 0 : index
    %c0_23 = arith.constant 0 : index
    %81 = vector.load %arg4[%c0_22, %c0_23] : memref<64x512xbf16, #tpu.memory_space<vmem>>, vector<64x512xbf16>
    %cst_24 = arith.constant dense<0.000000e+00> : vector<64x512xf32>
    %82 = tpu.matmul %80, %81, %cst_24 {dimension_numbers = #tpu.dot_dimension_numbers<[1], [0], [0], [1], [0, 0, 1, 1], [], []>} : vector<64x64xbf16>, vector<64x512xbf16>, vector<64x512xf32> -> vector<64x512xf32>
    %c0_25 = arith.constant 0 : index
    %c0_26 = arith.constant 0 : index
    %83 = vector.load %arg6[%c0_25, %c0_26] : memref<16x512xf32, #tpu.memory_space<vmem>>, vector<1x512xf32>
    %84 = vector.broadcast %83 : vector<1x512xf32> to vector<64x512xf32>
    %85 = arith.addf %82, %84 : vector<64x512xf32>
    %cst_27 = arith.constant 0.000000e+00 : f32
    %86 = vector.broadcast %cst_27 : f32 to vector<64x512xf32>
    %87 = arith.maximumf %85, %86 : vector<64x512xf32>
    %88 = arith.truncf %87 : vector<64x512xf32> to vector<64x512xbf16>
    %c0_28 = arith.constant 0 : index
    %c0_29 = arith.constant 0 : index
    %89 = vector.load %arg5[%c0_28, %c0_29] : memref<512x16xbf16, #tpu.memory_space<vmem>>, vector<512x16xbf16>
    %cst_30 = arith.constant dense<0.000000e+00> : vector<64x16xf32>
    %90 = tpu.matmul %88, %89, %cst_30 {dimension_numbers = #tpu.dot_dimension_numbers<[1], [0], [0], [1], [0, 0, 1, 1], [], []>} : vector<64x512xbf16>, vector<512x16xbf16>, vector<64x16xf32> -> vector<64x16xf32>
    %c3 = arith.constant 3 : index
    %c0_31 = arith.constant 0 : index
    %91 = vector.load %arg6[%c3, %c0_31] : memref<16x512xf32, #tpu.memory_space<vmem>>, vector<1x16xf32>
    %92 = vector.broadcast %91 : vector<1x16xf32> to vector<64x16xf32>
    %93 = arith.addf %90, %92 : vector<64x16xf32>
    %c0_32 = arith.constant 0 : index
    %c0_33 = arith.constant 0 : index
    %94 = vector.load %arg7[%c0_32, %c0_33] : memref<64x16xf32, #tpu.memory_space<vmem>>, vector<64x16xf32>
    tpu.vector_store %arg7[%c0_32, %c0_33], %93 {strides = array<i32>} : memref<64x16xf32, #tpu.memory_space<vmem>>, vector<64x16xf32>,
    return
  }
  func.func @transform_0(%arg0: i32) -> (i32, i32) {
    %c0_i32 = arith.constant 0 : i32
    %c0_i32_0 = arith.constant 0 : i32
    return %arg0, %c0_i32 : i32, i32
  }
  func.func @transform_1(%arg0: i32) -> (i32, i32) {
    %c0_i32 = arith.constant 0 : i32
    %c0_i32_0 = arith.constant 0 : i32
    %c0_i32_1 = arith.constant 0 : i32
    return %c0_i32, %c0_i32_0 : i32, i32
  }
  func.func @transform_2(%arg0: i32) -> (i32, i32) {
    %c0_i32 = arith.constant 0 : i32
    %c0_i32_0 = arith.constant 0 : i32
    %c0_i32_1 = arith.constant 0 : i32
    return %c0_i32, %c0_i32_0 : i32, i32
  }
  func.func @transform_3(%arg0: i32) -> (i32, i32) {
    %c0_i32 = arith.constant 0 : i32
    %c0_i32_0 = arith.constant 0 : i32
    %c0_i32_1 = arith.constant 0 : i32
    return %c0_i32, %c0_i32_0 : i32, i32
  }
  func.func @transform_4(%arg0: i32) -> (i32, i32) {
    %c0_i32 = arith.constant 0 : i32
    %c0_i32_0 = arith.constant 0 : i32
    %c0_i32_1 = arith.constant 0 : i32
    return %c0_i32, %c0_i32_0 : i32, i32
  }
  func.func @transform_5(%arg0: i32) -> (i32, i32) {
    %c0_i32 = arith.constant 0 : i32
    %c0_i32_0 = arith.constant 0 : i32
    %c0_i32_1 = arith.constant 0 : i32
    return %c0_i32, %c0_i32_0 : i32, i32
  }
  func.func @transform_6(%arg0: i32) -> (i32, i32) {
    %c0_i32 = arith.constant 0 : i32
    %c0_i32_0 = arith.constant 0 : i32
    return %arg0, %c0_i32 : i32, i32
  }
}

</mosaic_0001>

<llo_original>
// kernel: tile.33
$region0: #{tile.33}
  #allocation0 [shape = 's32[1]{0}', space=sflag, size = 0x4, scoped, tag = 'scoped memory for tile.33']
  %s0 = inlined_call_operand.vmem [shape: f32[4], index: 0, kind: input, shape index: {}]
  %s1 = inlined_call_operand.vmem [shape: f32[4,4], index: 1, kind: output, shape index: {}]
  // Predicated region
  $region2: #{tile.33} parent=0 // pred_check
    _
  $region3: #{tile.33} parent=0 // pred_check_branch
    %3 = sbr.rel (0) target = $region5
  $region4: #{tile.33} parent=0 // pred_region
    _
  $region5: #{tile.33} parent=0 // pred_fallthru
    _
  %v4 = vld [vmem:[%s0] ss:$0 sm:$0xff]
  %5 = vst [vmem:[%s1] sm:$0xf] %v4

// kernel: tile.38
$region0: #{tile.38}
  #allocation0 [shape = 's32[1]{0}', space=sflag, size = 0x4, scoped, tag = 'scoped memory for tile.38']
  %s0 = inlined_call_operand.vmem [shape: f32[16], index: 0, kind: input, shape index: {}]
  %s1 = inlined_call_operand.vmem [shape: f32[4,16], index: 1, kind: output, shape index: {}]
  // Predicated region
  $region2: #{tile.38} parent=0 // pred_check
    _
  $region3: #{tile.38} parent=0 // pred_check_branch
    %3 = sbr.rel (0) target = $region5
  $region4: #{tile.38} parent=0 // pred_region
    _
  $region5: #{tile.38} parent=0 // pred_fallthru
    _
  %v4 = vld [vmem:[%s0] ss:$0 sm:$0xff]
  %5 = vst [vmem:[%s1] sm:$0xf] %v4

// kernel: tile.28
$region0: #{tile.28}
  #allocation0 [shape = 's32[1]{0}', space=sflag, size = 0x4, scoped, tag = 'scoped memory for tile.28']
  %s0 = inlined_call_operand.vmem [shape: f32[16], index: 0, kind: input, shape index: {}]
  %s1 = inlined_call_operand.vmem [shape: f32[16,16], index: 1, kind: output, shape index: {}]
  // Predicated region
  $region2: #{tile.28} parent=0 // pred_check
    _
  $region3: #{tile.28} parent=0 // pred_check_branch
    %3 = sbr.rel (0) target = $region5
  $region4: #{tile.28} parent=0 // pred_region
    _
  $region5: #{tile.28} parent=0 // pred_fallthru
    _
  %v4 = vld [vmem:[%s0] ss:$0 sm:$0xff]
  %5 = vst [vmem:[%s1] sm:$0xff] %v4
  %s6 = scalar_lea.vmem %s1, 8
  %7 = vst [vmem:[%s6] sm:$0xff] %v4

// kernel: tile.43
$region0: #{tile.43}
  #allocation0 [shape = 's32[1]{0}', space=sflag, size = 0x4, scoped, tag = 'scoped memory for tile.43']
  %s0 = inlined_call_operand.vmem [shape: f32[32], index: 0, kind: input, shape index: {}]
  %s1 = inlined_call_operand.vmem [shape: f32[16,32], index: 1, kind: output, shape index: {}]
  // Predicated region
  $region2: #{tile.43} parent=0 // pred_check
    _
  $region3: #{tile.43} parent=0 // pred_check_branch
    %3 = sbr.rel (0) target = $region5
  $region4: #{tile.43} parent=0 // pred_region
    _
  $region5: #{tile.43} parent=0 // pred_fallthru
    _
  %v4 = vld [vmem:[%s0] ss:$0 sm:$0xff]
  %5 = vst [vmem:[%s1] sm:$0xff] %v4
  %s6 = scalar_lea.vmem %s1, 8
  %7 = vst [vmem:[%s6] sm:$0xff] %v4

// kernel: auto_ggcnn_forward.1
$region0: #{auto_ggcnn_forward.1}
  #allocation0 [shape = 'u32[]', space=smem, size = 0x4, offset = 0x4, fixed_abs, tag = 'smem constant byte address 0x4 - core index']
  #allocation1 [shape = 'u32[144,128]{1,0:T(1,128)}', space=vmem, size = 0x12000, scoped, tag = 'internal scratch']
  %s0 = inlined_call_operand.vmem [shape: bf16[128,128], index: 0, kind: input, shape index: {}]
  %s1 = inlined_call_operand.vmem [shape: bf16[128,256], index: 1, kind: input, shape index: {}]
  %s2 = inlined_call_operand.vmem [shape: bf16[256,16], index: 2, kind: input, shape index: {}]
  %s3 = inlined_call_operand.vmem [shape: bf16[64,512], index: 3, kind: input, shape index: {}]
  %s4 = inlined_call_operand.vmem [shape: bf16[512,16], index: 4, kind: input, shape index: {}]
  %s5 = inlined_call_operand.vmem [shape: f32[16,512], index: 5, kind: input, shape index: {}]
  %s6 = inlined_call_operand.vmem [shape: f32[128,16], index: 6, kind: output, shape index: {}]
  %s7 = sld [smem:[#allocation0]]
  $region57: #{auto_ggcnn_forward.1} parent=0
    _
  %s9 = ssub.s32 1, %s7
  %s10 = scalar_select 0, %s9, %s7
  loop: start=0, step=1, limit=4
  $region2: #{auto_ggcnn_forward.1} parent=0 // loop_pre_header
    _
  $region3: #{auto_ggcnn_forward.1} parent=0 // loop_header
    %s12 = sphi 0, %s16
    %p13 = scmp.ge.s32.totalorder %s12, 4
    %s22 = sphi 0, %s24
    %s25 = sphi 0, %s22
    %s26 = sphi 0, %s25
    %s42 = sphi 0, %s26
    %s46 = sphi 0, %s46
    %s48 = sphi 0, %s46
    %s49 = sphi 0, %s48
    %s63 = sphi 0, %s49
    %s67 = sphi 0, %s67
    %s69 = sphi 0, %s67
    %s70 = sphi 0, %s69
    %s84 = sphi 0, %s70
    %s88 = sphi 0, %s88
    %s90 = sphi 0, %s88
    %s91 = sphi 0, %s90
    %s105 = sphi 0, %s91
    %s109 = sphi 0, %s109
    %s111 = sphi 0, %s109
    %s112 = sphi 0, %s111
    %s126 = sphi 0, %s112
    %s130 = sphi 0, %s130
    %s132 = sphi 0, %s130
    %s133 = sphi 0, %s132
    %s147 = sphi 0, %s133
    %s153 = sphi 0, %s155
    %s156 = sphi 0, %s153
    %s157 = sphi 0, %s156
    %s173 = sphi 0, %s157
  $region4: #{auto_ggcnn_forward.1} parent=0 // loop_header_branch
    %15 = sbr.rel (%p13) target = $region8
  $region5: #{auto_ggcnn_forward.1} parent=0 // loop_body
    %s17 = ssub.s32 %s12, 1
    %s18 = ssub.s32 %s12, 2
    %s19 = sadd.s32 %s12, 1
    %s20 = ssub.s32 %s12, %s19
    %p21 = scmp.eq.s32.totalorder %s20, 0
    %s23 = sadd.s32 %s22, 1
    %s24 = scalar_select %p21, %s22, %s23
    %p27 = pneg %p21
    %p28 = scmp.eq.s32.totalorder %s12, 1
    %p29 = por %p27, %p28
    %p30 = scmp.ne.s32.totalorder %s22, %s25
    %p31 = scmp.eq.s32.totalorder %s12, 0
    %p32 = por %p30, %p31
    %p33 = scmp.ne.s32.totalorder %s22, %s25
    %p34 = scmp.eq.s32.totalorder %s17, 1
    %p35 = por %p33, %p34
    %p36 = scmp.ne.s32.totalorder %s25, %s26
    %p37 = scmp.eq.s32.totalorder %s17, 0
    %p38 = por %p36, %p37
    %p39 = scmp.ne.s32.totalorder %s25, %s26
    %p40 = scmp.eq.s32.totalorder %s18, 1
    %p41 = por %p39, %p40
    %p43 = scmp.ne.s32.totalorder %s26, %s42
    %p44 = scmp.eq.s32.totalorder %s18, 0
    %p45 = por %p43, %p44
    %s47 = sadd.s32 %s46, 1
    %p50 = scmp.eq.s32.totalorder %s12, 1
    %p51 = scmp.ne.s32.totalorder %s46, %s48
    %p52 = scmp.eq.s32.totalorder %s12, 0
    %p53 = por %p51, %p52
    %p54 = scmp.ne.s32.totalorder %s46, %s48
    %p55 = scmp.eq.s32.totalorder %s17, 1
    %p56 = por %p54, %p55
    %p57 = scmp.ne.s32.totalorder %s48, %s49
    %p58 = scmp.eq.s32.totalorder %s17, 0
    %p59 = por %p57, %p58
    %p60 = scmp.ne.s32.totalorder %s48, %s49
    %p61 = scmp.eq.s32.totalorder %s18, 1
    %p62 = por %p60, %p61
    %p64 = scmp.ne.s32.totalorder %s49, %s63
    %p65 = scmp.eq.s32.totalorder %s18, 0
    %p66 = por %p64, %p65
    %s68 = sadd.s32 %s67, 1
    %p71 = scmp.eq.s32.totalorder %s12, 1
    %p72 = scmp.ne.s32.totalorder %s67, %s69
    %p73 = scmp.eq.s32.totalorder %s12, 0
    %p74 = por %p72, %p73
    %p75 = scmp.ne.s32.totalorder %s67, %s69
    %p76 = scmp.eq.s32.totalorder %s17, 1
    %p77 = por %p75, %p76
    %p78 = scmp.ne.s32.totalorder %s69, %s70
    %p79 = scmp.eq.s32.totalorder %s17, 0
    %p80 = por %p78, %p79
    %p81 = scmp.ne.s32.totalorder %s69, %s70
    %p82 = scmp.eq.s32.totalorder %s18, 1
    %p83 = por %p81, %p82
    %p85 = scmp.ne.s32.totalorder %s70, %s84
    %p86 = scmp.eq.s32.totalorder %s18, 0
    %p87 = por %p85, %p86
    %s89 = sadd.s32 %s88, 1
    %p92 = scmp.eq.s32.totalorder %s12, 1
    %p93 = scmp.ne.s32.totalorder %s88, %s90
    %p94 = scmp.eq.s32.totalorder %s12, 0
    %p95 = por %p93, %p94
    %p96 = scmp.ne.s32.totalorder %s88, %s90
    %p97 = scmp.eq.s32.totalorder %s17, 1
    %p98 = por %p96, %p97
    %p99 = scmp.ne.s32.totalorder %s90, %s91
    %p100 = scmp.eq.s32.totalorder %s17, 0
    %p101 = por %p99, %p100
    %p102 = scmp.ne.s32.totalorder %s90, %s91
    %p103 = scmp.eq.s32.totalorder %s18, 1
    %p104 = por %p102, %p103
    %p106 = scmp.ne.s32.totalorder %s91, %s105
    %p107 = scmp.eq.s32.totalorder %s18, 0
    %p108 = por %p106, %p107
    %s110 = sadd.s32 %s109, 1
    %p113 = scmp.eq.s32.totalorder %s12, 1
    %p114 = scmp.ne.s32.totalorder %s109, %s111
    %p115 = scmp.eq.s32.totalorder %s12, 0
    %p116 = por %p114, %p115
    %p117 = scmp.ne.s32.totalorder %s109, %s111
    %p118 = scmp.eq.s32.totalorder %s17, 1
    %p119 = por %p117, %p118
    %p120 = scmp.ne.s32.totalorder %s111, %s112
    %p121 = scmp.eq.s32.totalorder %s17, 0
    %p122 = por %p120, %p121
    %p123 = scmp.ne.s32.totalorder %s111, %s112
    %p124 = scmp.eq.s32.totalorder %s18, 1
    %p125 = por %p123, %p124
    %p127 = scmp.ne.s32.totalorder %s112, %s126
    %p128 = scmp.eq.s32.totalorder %s18, 0
    %p129 = por %p127, %p128
    %s131 = sadd.s32 %s130, 1
    %p134 = scmp.eq.s32.totalorder %s12, 1
    %p135 = scmp.ne.s32.totalorder %s130, %s132
    %p136 = scmp.eq.s32.totalorder %s12, 0
    %p137 = por %p135, %p136
    %p138 = scmp.ne.s32.totalorder %s130, %s132
    %p139 = scmp.eq.s32.totalorder %s17, 1
    %p140 = por %p138, %p139
    %p141 = scmp.ne.s32.totalorder %s132, %s133
    %p142 = scmp.eq.s32.totalorder %s17, 0
    %p143 = por %p141, %p142
    %p144 = scmp.ne.s32.totalorder %s132, %s133
    %p145 = scmp.eq.s32.totalorder %s18, 1
    %p146 = por %p144, %p145
    %p148 = scmp.ne.s32.totalorder %s133, %s147
    %p149 = scmp.eq.s32.totalorder %s18, 0
    %p150 = por %p148, %p149
    %s151 = ssub.s32 %s12, %s19
    %p152 = scmp.eq.s32.totalorder %s151, 0
    %s154 = sadd.s32 %s153, 1
    %s155 = scalar_select %p152, %s153, %s154
    %p158 = pneg %p152
    %p159 = scmp.eq.s32.totalorder %s12, 1
    %p160 = por %p158, %p159
    %p161 = scmp.ne.s32.totalorder %s153, %s156
    %p162 = scmp.eq.s32.totalorder %s12, 0
    %p163 = por %p161, %p162
    %p164 = scmp.ne.s32.totalorder %s153, %s156
    %p165 = scmp.eq.s32.totalorder %s17, 1
    %p166 = por %p164, %p165
    %p167 = scmp.ne.s32.totalorder %s156, %s157
    %p168 = scmp.eq.s32.totalorder %s17, 0
    %p169 = por %p167, %p168
    %p170 = scmp.ne.s32.totalorder %s156, %s157
    %p171 = scmp.eq.s32.totalorder %s18, 1
    %p172 = por %p170, %p171
    %p174 = scmp.ne.s32.totalorder %s157, %s173
    %p175 = scmp.eq.s32.totalorder %s18, 0
    %p176 = por %p174, %p175
    %p177 = scmp.le.s32.totalorder 1, %s12
    %p178 = scmp.lt.s32.totalorder %s12, 3
    %p179 = pnand %p177, %p178
    %p180 = pneg %p179
    // Predicated region
    $region9: #{auto_ggcnn_forward.1} parent=5 // pred_check
      _
    $region10: #{auto_ggcnn_forward.1} parent=5 // pred_check_branch
      %182 = sbr.rel (%p179) target = $region12
    $region11: #{auto_ggcnn_forward.1} parent=5 // pred_region
      %s183 = ssub.s32 %s12, 1
      // Predicated region
      $region13: #{auto_ggcnn_forward.1} parent=11 // pred_check
        %p184 = pneg %p59
      $region14: #{auto_ggcnn_forward.1} parent=11 // pred_check_branch
        %186 = sbr.rel (%p184) target = $region16
      $region15: #{auto_ggcnn_forward.1} parent=11 // pred_region
        _
      $region16: #{auto_ggcnn_forward.1} parent=11 // pred_fallthru
        _
      // Predicated region
      $region17: #{auto_ggcnn_forward.1} parent=11 // pred_check
        %p187 = pneg %p80
      $region18: #{auto_ggcnn_forward.1} parent=11 // pred_check_branch
        %189 = sbr.rel (%p187) target = $region20
      $region19: #{auto_ggcnn_forward.1} parent=11 // pred_region
        _
      $region20: #{auto_ggcnn_forward.1} parent=11 // pred_fallthru
        _
      // Predicated region
      $region21: #{auto_ggcnn_forward.1} parent=11 // pred_check
        %p190 = pneg %p101
      $region22: #{auto_ggcnn_forward.1} parent=11 // pred_check_branch
        %192 = sbr.rel (%p190) target = $region24
      $region23: #{auto_ggcnn_forward.1} parent=11 // pred_region
        _
      $region24: #{auto_ggcnn_forward.1} parent=11 // pred_fallthru
        _
      // Predicated region
      $region25: #{auto_ggcnn_forward.1} parent=11 // pred_check
        %p193 = pneg %p122
      $region26: #{auto_ggcnn_forward.1} parent=11 // pred_check_branch
        %195 = sbr.rel (%p193) target = $region28
      $region27: #{auto_ggcnn_forward.1} parent=11 // pred_region
        _
      $region28: #{auto_ggcnn_forward.1} parent=11 // pred_fallthru
        _
      // Predicated region
      $region29: #{auto_ggcnn_forward.1} parent=11 // pred_check
        %p196 = pneg %p143
      $region30: #{auto_ggcnn_forward.1} parent=11 // pred_check_branch
        %198 = sbr.rel (%p196) target = $region32
      $region31: #{auto_ggcnn_forward.1} parent=11 // pred_region
        _
      $region32: #{auto_ggcnn_forward.1} parent=11 // pred_fallthru
        _
    $region12: #{auto_ggcnn_forward.1} parent=5 // pred_fallthru
      _
    %p199 = scmp.lt.s32.totalorder %s12, 2
    // Predicated region
    $region33: #{auto_ggcnn_forward.1} parent=5 // pred_check
      %p200 = pneg %p199
    $region34: #{auto_ggcnn_forward.1} parent=5 // pred_check_branch
      %202 = sbr.rel (%p200) target = $region36
    $region35: #{auto_ggcnn_forward.1} parent=5 // pred_region
      // Predicated region
      $region37: #{auto_ggcnn_forward.1} parent=35 // pred_check
        %p203 = pneg %p32
      $region38: #{auto_ggcnn_forward.1} parent=35 // pred_check_branch
        %205 = sbr.rel (%p203) target = $region40
      $region39: #{auto_ggcnn_forward.1} parent=35 // pred_region
        %s206 = smul.u32 8, %s12
        %p207 = scmp.lt.s32.totalorder %s206, 15
        %s208 = scalar_select %p207, %s206, 15
        %s209 = smul.addr %s208, 4
        %s210 = scalar_lea.vmem %s0, %s209
        %s211 = smul.u32 8, %s12
      $region40: #{auto_ggcnn_forward.1} parent=35 // pred_fallthru
        _
    $region36: #{auto_ggcnn_forward.1} parent=5 // pred_fallthru
      _
    %p212 = scmp.le.s32.totalorder 1, %s12
    %p213 = scmp.lt.s32.totalorder %s12, 3
    %p214 = pnand %p212, %p213
    %p215 = pneg %p214
    // Predicated region
    $region41: #{auto_ggcnn_forward.1} parent=5 // pred_check
      _
    $region42: #{auto_ggcnn_forward.1} parent=5 // pred_check_branch
      %217 = sbr.rel (%p214) target = $region44
    $region43: #{auto_ggcnn_forward.1} parent=5 // pred_region
      %s218 = ssub.s32 %s12, 1
      %s219 = smul.u32 8, %s17
      %p220 = scmp.lt.s32.totalorder %s219, 15
      %s221 = scalar_select %p220, %s219, 15
      %s222 = smul.addr %s221, 4
      %s223 = scalar_lea.vmem %s0, %s222
      %p224 = pneg %p38
      %p225 = pneg %p35
      %p226 = pneg %p59
      %p227 = pneg %p56
      %p228 = pneg %p80
      %p229 = pneg %p77
      %p230 = pneg %p101
      %p231 = pneg %p98
      %p232 = pneg %p122
      %p233 = pneg %p119
      %p234 = pneg %p143
      %p235 = pneg %p140
      %p236 = pneg %p169
      %p237 = pneg %p166
      %s238 = smul.u32 8, %s17
      %p239 = scmp.lt.s32.totalorder %s238, 15
      %s240 = scalar_select %p239, %s238, 15
      %s241 = smul.addr %s240, 8
      %s242 = scalar_lea.vmem %s6, %s241
      %s243 = smul.u32 8, %s17
      %p244 = scmp.lt.s32.totalorder %s243, 15
      %s245 = scalar_select %p244, %s243, 15
      %s246 = smul.addr %s245, 4
      %s247 = scalar_lea.vmem %s0, %s246
      %s248 = smul.u32 8, %s17
      %s249 = smul.u32 8, %s17
      %p250 = scmp.lt.s32.totalorder %s249, 15
      %s251 = scalar_select %p250, %s249, 15
      %s252 = smul.addr %s251, 8
      %s253 = scalar_lea.vmem %s6, %s252
      %s254 = smul.u32 8, %s17
      %v256 = vld [vmem:[%s247] sm:$0xf]
      %v257 = vld [vmem:[%s247 + $0x4] sm:$0xf]
      %v258 = vld [vmem:[%s247 + $0x8] sm:$0xf]
      %v259 = vld [vmem:[%s247 + $0xc] sm:$0xf]
      %v260 = vld [vmem:[%s247 + $0x10] sm:$0xf]
      %v261 = vld [vmem:[%s247 + $0x14] sm:$0xf]
      %v262 = vld [vmem:[%s247 + $0x18] sm:$0xf]
      %v263 = vld [vmem:[%s247 + $0x1c] sm:$0xf]
      %v264 = vld [vmem:[%s1] sm:$0xff]
      %v265 = vld [vmem:[%s1 + $0x8] sm:$0xff]
      %v266 = vld [vmem:[%s1 + $0x10] sm:$0xff]
      %v267 = vld [vmem:[%s1 + $0x18] sm:$0xff]
      %v268 = vld [vmem:[%s1 + $0x20] sm:$0xff]
      %v269 = vld [vmem:[%s1 + $0x28] sm:$0xff]
      %v270 = vld [vmem:[%s1 + $0x30] sm:$0xff]
      %v271 = vld [vmem:[%s1 + $0x38] sm:$0xff]
      %v272 = vld [vmem:[%s1 + $0x40] sm:$0xff]
      %v273 = vld [vmem:[%s1 + $0x48] sm:$0xff]
      %v274 = vld [vmem:[%s1 + $0x50] sm:$0xff]
      %v275 = vld [vmem:[%s1 + $0x58] sm:$0xff]
      %v276 = vld [vmem:[%s1 + $0x60] sm:$0xff]
      %v277 = vld [vmem:[%s1 + $0x68] sm:$0xff]
      %v278 = vld [vmem:[%s1 + $0x70] sm:$0xff]
      %v279 = vld [vmem:[%s1 + $0x78] sm:$0xff]
      %s280 = scalar_lea.vmem %s5, 1
      %v281 = vld [vmem:[%s280] ss:$8 sm:$0x3]
      %v283 = vlaneseq
      %v284 = vshrl.u32 %v283, 7
      %v285 = vsub.s32 0, %v284
      %v286 = vrot.slane %v281, %v285
      %v287 = vlaneseq
      %v288 = vshrl.u32 %v287, 7
      %v289 = vsub.s32 1, %v288
      %v290 = vrot.slane %v281, %v289
      %v301 = vunpack.c.l.b16 %v256
      %v302 = vunpack.c.l.b16 %v257
      %v303 = vunpack.c.l.b16 %v258
      %v304 = vunpack.c.l.b16 %v259
      %v305 = vunpack.c.l.b16 %v260
      %v306 = vunpack.c.l.b16 %v261
      %v307 = vunpack.c.l.b16 %v262
      %v308 = vunpack.c.l.b16 %v263
      %v309 = vpack.c.b16 %v302, %v301
      %v310 = vpack.c.b16 %v304, %v303
      %v311 = vpack.c.b16 %v306, %v305
      %v312 = vpack.c.b16 %v308, %v307
      %v333 = vunpack.c.l.b16 %v264
      %v334 = vunpack.c.h.b16 %v264
      %v335 = vunpack.c.l.b16 %v265
      %v336 = vunpack.c.h.b16 %v265
      %v337 = vunpack.c.l.b16 %v266
      %v338 = vunpack.c.h.b16 %v266
      %v339 = vunpack.c.l.b16 %v267
      %v340 = vunpack.c.h.b16 %v267
      %v341 = vunpack.c.l.b16 %v268
      %v342 = vunpack.c.h.b16 %v268
      %v343 = vunpack.c.l.b16 %v269
      %v344 = vunpack.c.h.b16 %v269
      %v345 = vunpack.c.l.b16 %v270
      %v346 = vunpack.c.h.b16 %v270
      %v347 = vunpack.c.l.b16 %v271
      %v348 = vunpack.c.h.b16 %v271
      %v349 = vunpack.c.l.b16 %v272
      %v350 = vunpack.c.h.b16 %v272
      %v351 = vunpack.c.l.b16 %v273
      %v352 = vunpack.c.h.b16 %v273
      %v353 = vunpack.c.l.b16 %v274
      %v354 = vunpack.c.h.b16 %v274
      %v355 = vunpack.c.l.b16 %v275
      %v356 = vunpack.c.h.b16 %v275
      %v357 = vunpack.c.l.b16 %v276
      %v358 = vunpack.c.h.b16 %v276
      %v359 = vunpack.c.l.b16 %v277
      %v360 = vunpack.c.h.b16 %v277
      %v361 = vunpack.c.l.b16 %v278
      %v362 = vunpack.c.h.b16 %v278
      %v363 = vunpack.c.l.b16 %v279
      %v364 = vunpack.c.h.b16 %v279
      %v365 = vpack.c.b16 %v335, %v333
      %v366 = vpack.c.b16 %v336, %v334
      %v367 = vpack.c.b16 %v339, %v337
      %v368 = vpack.c.b16 %v340, %v338
      %v369 = vpack.c.b16 %v343, %v341
      %v370 = vpack.c.b16 %v344, %v342
      %v371 = vpack.c.b16 %v347, %v345
      %v372 = vpack.c.b16 %v348, %v346
      %v373 = vpack.c.b16 %v351, %v349
      %v374 = vpack.c.b16 %v352, %v350
      %v375 = vpack.c.b16 %v355, %v353
      %v376 = vpack.c.b16 %v356, %v354
      %v377 = vpack.c.b16 %v359, %v357
      %v378 = vpack.c.b16 %v360, %v358
      %v379 = vpack.c.b16 %v363, %v361
      %v380 = vpack.c.b16 %v364, %v362
      %397 = vmatprep.subr.bf16.mxu0 %v366
      %398 = vmatpush1.bf16.msra.mxu0 %v365
      %399 = vmatprep.subr.bf16.mxu0 %v368
      %400 = vmatpush1.bf16.msra.mxu0 %v367
      %401 = vmatprep.subr.bf16.mxu0 %v370
      %402 = vmatpush1.bf16.msra.mxu0 %v369
      %403 = vmatprep.subr.bf16.mxu0 %v372
      %404 = vmatpush1.bf16.msra.mxu0 %v371
      %405 = vmatprep.subr.bf16.mxu0 %v374
      %406 = vmatpush1.bf16.msra.mxu0 %v373
      %407 = vmatprep.subr.bf16.mxu0 %v376
      %408 = vmatpush1.bf16.msra.mxu0 %v375
      %409 = vmatprep.subr.bf16.mxu0 %v378
      %410 = vmatpush1.bf16.msra.mxu0 %v377
      %411 = vmatprep.subr.bf16.mxu0 %v380
      %412 = vmatpush1.bf16.msra.mxu0 %v379
      %413 = vmatprep.subr.bf16.mxu0 0
      %414 = vmatpush1.bf16.msra.mxu0 0
      %415 = vmatprep.subr.bf16.mxu0 0
      %416 = vmatpush1.bf16.msra.mxu0 0
      %417 = vmatprep.subr.bf16.mxu0 0
      %418 = vmatpush1.bf16.msra.mxu0 0
      %419 = vmatprep.subr.bf16.mxu0 0
      %420 = vmatpush1.bf16.msra.mxu0 0
      %421 = vmatprep.subr.bf16.mxu0 0
      %422 = vmatpush1.bf16.msra.mxu0 0
      %423 = vmatprep.subr.bf16.mxu0 0
      %424 = vmatpush1.bf16.msra.mxu0 0
      %425 = vmatprep.subr.bf16.mxu0 0
      %426 = vmatpush1.bf16.msra.mxu0 0
      %427 = vmatprep.subr.bf16.mxu0 0
      %428 = vmatpush1.bf16.msra.mxu0 0
      %429 = vmatprep.mubr.bf16.mxu0 0
      %430 = vmatmul.mubr.bf16.gmra.mrb[0].mxu0 %v309
      %v431 = vpop.f32.mrb[0].mxu0
      %v432 = vadd.f32 %v286, %v431
      %v433 = vpop.f32.mrb[0].mxu0
      %v434 = vadd.f32 %v290, %v433
      %v435 = vpop.f32.mrb[0].mxu0
      %v436 = vadd.f32 %v286, %v435
      %v437 = vpop.f32.mrb[0].mxu0
      %v438 = vadd.f32 %v290, %v437
      %439 = vmatprep.mubr.bf16.mxu0 0
      %440 = vmatmul.mubr.bf16.gmra.mrb[0].mxu0 %v310
      %v441 = vpop.f32.mrb[0].mxu0
      %v442 = vadd.f32 %v286, %v441
      %v443 = vpop.f32.mrb[0].mxu0
      %v444 = vadd.f32 %v290, %v443
      %v445 = vpop.f32.mrb[0].mxu0
      %v446 = vadd.f32 %v286, %v445
      %v447 = vpop.f32.mrb[0].mxu0
      %v448 = vadd.f32 %v290, %v447
      %449 = vmatprep.mubr.bf16.mxu0 0
      %450 = vmatmul.mubr.bf16.gmra.mrb[0].mxu0 %v311
      %v451 = vpop.f32.mrb[0].mxu0
      %v452 = vadd.f32 %v286, %v451
      %v453 = vpop.f32.mrb[0].mxu0
      %v454 = vadd.f32 %v290, %v453
      %v455 = vpop.f32.mrb[0].mxu0
      %v456 = vadd.f32 %v286, %v455
      %v457 = vpop.f32.mrb[0].mxu0
      %v458 = vadd.f32 %v290, %v457
      %459 = vmatprep.mubr.bf16.mxu0 0
      %460 = vmatmul.mubr.bf16.gmra.mrb[0].mxu0 %v312
      %v461 = vpop.f32.mrb[0].mxu0
      %v462 = vadd.f32 %v286, %v461
      %v463 = vpop.f32.mrb[0].mxu0
      %v464 = vadd.f32 %v290, %v463
      %v465 = vpop.f32.mrb[0].mxu0
      %v466 = vadd.f32 %v286, %v465
      %v467 = vpop.f32.mrb[0].mxu0
      %v468 = vadd.f32 %v290, %v467
      %469 = vdwg.mxu0
      %v470 = vmax.f32 %v432, 0.0
      %v471 = vmax.f32 %v434, 0.0
      %v472 = vmax.f32 %v436, 0.0
      %v473 = vmax.f32 %v438, 0.0
      %v474 = vmax.f32 %v442, 0.0
      %v475 = vmax.f32 %v444, 0.0
      %v476 = vmax.f32 %v446, 0.0
      %v477 = vmax.f32 %v448, 0.0
      %v478 = vmax.f32 %v452, 0.0
      %v479 = vmax.f32 %v454, 0.0
      %v480 = vmax.f32 %v456, 0.0
      %v481 = vmax.f32 %v458, 0.0
      %v482 = vmax.f32 %v462, 0.0
      %v483 = vmax.f32 %v464, 0.0
      %v484 = vmax.f32 %v466, 0.0
      %v485 = vmax.f32 %v468, 0.0
      %v486 = vunpack.c.l.bf16 %v256
      %v487 = vunpack.c.l.bf16 %v257
      %v488 = vunpack.c.l.bf16 %v258
      %v489 = vunpack.c.l.bf16 %v259
      %v490 = vunpack.c.l.bf16 %v260
      %v491 = vunpack.c.l.bf16 %v261
      %v492 = vunpack.c.l.bf16 %v262
      %v493 = vunpack.c.l.bf16 %v263
      %s494 = scalar_lea.vmem %s5, 36
      %v495 = vld [vmem:[%s494] ss:$8 sm:$0x3]
      %497 = vset.pattern.permute.xlu0 108
      %498 = vperm.xlu0 %497, %v486
      %v499 = vpop.permute.xlu0 %498
      %502 = vset.pattern.permute.xlu0 108
      %503 = vperm.xlu0 %502, %v487
      %v504 = vpop.permute.xlu0 %503
      %507 = vset.pattern.permute.xlu0 108
      %508 = vperm.xlu0 %507, %v488
      %v509 = vpop.permute.xlu0 %508
      %512 = vset.pattern.permute.xlu0 108
      %513 = vperm.xlu0 %512, %v489
      %v514 = vpop.permute.xlu0 %513
      %517 = vset.pattern.permute.xlu0 108
      %518 = vperm.xlu0 %517, %v490
      %v519 = vpop.permute.xlu0 %518
      %522 = vset.pattern.permute.xlu0 108
      %523 = vperm.xlu0 %522, %v491
      %v524 = vpop.permute.xlu0 %523
      %527 = vset.pattern.permute.xlu0 108
      %528 = vperm.xlu0 %527, %v492
      %v529 = vpop.permute.xlu0 %528
      %532 = vset.pattern.permute.xlu0 108
      %533 = vperm.xlu0 %532, %v493
      %v534 = vpop.permute.xlu0 %533
      %v537 = vlaneseq
      %v538 = vshrl.u32 %v537, 7
      %v539 = vsub.s32 0, %v538
      %v540 = vrot.slane %v495, %v539
      %v541 = vlaneseq
      %v542 = vshrl.u32 %v541, 7
      %v543 = vsub.s32 1, %v542
      %v544 = vrot.slane %v495, %v543
      %v547 = vmul.f32 %v499, %v540
      %v548 = vmul.f32 %v499, %v544
      %v549 = vmul.f32 %v504, %v540
      %v550 = vmul.f32 %v504, %v544
      %v551 = vmul.f32 %v509, %v540
      %v552 = vmul.f32 %v509, %v544
      %v553 = vmul.f32 %v514, %v540
      %v554 = vmul.f32 %v514, %v544
      %v555 = vmul.f32 %v519, %v540
      %v556 = vmul.f32 %v519, %v544
      %v557 = vmul.f32 %v524, %v540
      %v558 = vmul.f32 %v524, %v544
      %v559 = vmul.f32 %v529, %v540
      %v560 = vmul.f32 %v529, %v544
      %v561 = vmul.f32 %v534, %v540
      %v562 = vmul.f32 %v534, %v544
      %s563 = scalar_lea.vmem %s5, 37
      %v564 = vld [vmem:[%s563] ss:$8 sm:$0x3]
      %565 = vset.pattern.permute.xlu0 109
      %566 = vperm.xlu0 %565, %v486
      %v567 = vpop.permute.xlu0 %566
      %569 = vset.pattern.permute.xlu0 109
      %570 = vperm.xlu0 %569, %v487
      %v571 = vpop.permute.xlu0 %570
      %573 = vset.pattern.permute.xlu0 109
      %574 = vperm.xlu0 %573, %v488
      %v575 = vpop.permute.xlu0 %574
      %577 = vset.pattern.permute.xlu0 109
      %578 = vperm.xlu0 %577, %v489
      %v579 = vpop.permute.xlu0 %578
      %581 = vset.pattern.permute.xlu0 109
      %582 = vperm.xlu0 %581, %v490
      %v583 = vpop.permute.xlu0 %582
      %585 = vset.pattern.permute.xlu0 109
      %586 = vperm.xlu0 %585, %v491
      %v587 = vpop.permute.xlu0 %586
      %589 = vset.pattern.permute.xlu0 109
      %590 = vperm.xlu0 %589, %v492
      %v591 = vpop.permute.xlu0 %590
      %593 = vset.pattern.permute.xlu0 109
      %594 = vperm.xlu0 %593, %v493
      %v595 = vpop.permute.xlu0 %594
      %v598 = vlaneseq
      %v599 = vshrl.u32 %v598, 7
      %v600 = vsub.s32 0, %v599
      %v601 = vrot.slane %v564, %v600
      %v602 = vlaneseq
      %v603 = vshrl.u32 %v602, 7
      %v604 = vsub.s32 1, %v603
      %v605 = vrot.slane %v564, %v604
      %v608 = vmul.f32 %v567, %v601
      %v609 = vmul.f32 %v567, %v605
      %v610 = vmul.f32 %v571, %v601
      %v611 = vmul.f32 %v571, %v605
      %v612 = vmul.f32 %v575, %v601
      %v613 = vmul.f32 %v575, %v605
      %v614 = vmul.f32 %v579, %v601
      %v615 = vmul.f32 %v579, %v605
      %v616 = vmul.f32 %v583, %v601
      %v617 = vmul.f32 %v583, %v605
      %v618 = vmul.f32 %v587, %v601
      %v619 = vmul.f32 %v587, %v605
      %v620 = vmul.f32 %v591, %v601
      %v621 = vmul.f32 %v591, %v605
      %v622 = vmul.f32 %v595, %v601
      %v623 = vmul.f32 %v595, %v605
      %v624 = vadd.f32 %v547, %v608
      %v625 = vadd.f32 %v548, %v609
      %v626 = vadd.f32 %v549, %v610
      %v627 = vadd.f32 %v550, %v611
      %v628 = vadd.f32 %v551, %v612
      %v629 = vadd.f32 %v552, %v613
      %v630 = vadd.f32 %v553, %v614
      %v631 = vadd.f32 %v554, %v615
      %v632 = vadd.f32 %v555, %v616
      %v633 = vadd.f32 %v556, %v617
      %v634 = vadd.f32 %v557, %v618
      %v635 = vadd.f32 %v558, %v619
      %v636 = vadd.f32 %v559, %v620
      %v637 = vadd.f32 %v560, %v621
      %v638 = vadd.f32 %v561, %v622
      %v639 = vadd.f32 %v562, %v623
      %s640 = scalar_lea.vmem %s5, 38
      %v641 = vld [vmem:[%s640] ss:$8 sm:$0x3]
      %642 = vset.pattern.permute.xlu0 110
      %643 = vperm.xlu0 %642, %v486
      %v644 = vpop.permute.xlu0 %643
      %646 = vset.pattern.permute.xlu0 110
      %647 = vperm.xlu0 %646, %v487
      %v648 = vpop.permute.xlu0 %647
      %650 = vset.pattern.permute.xlu0 110
      %651 = vperm.xlu0 %650, %v488
      %v652 = vpop.permute.xlu0 %651
      %654 = vset.pattern.permute.xlu0 110
      %655 = vperm.xlu0 %654, %v489
      %v656 = vpop.permute.xlu0 %655
      %658 = vset.pattern.permute.xlu0 110
      %659 = vperm.xlu0 %658, %v490
      %v660 = vpop.permute.xlu0 %659
      %662 = vset.pattern.permute.xlu0 110
      %663 = vperm.xlu0 %662, %v491
      %v664 = vpop.permute.xlu0 %663
      %666 = vset.pattern.permute.xlu0 110
      %667 = vperm.xlu0 %666, %v492
      %v668 = vpop.permute.xlu0 %667
      %670 = vset.pattern.permute.xlu0 110
      %671 = vperm.xlu0 %670, %v493
      %v672 = vpop.permute.xlu0 %671
      %v675 = vlaneseq
      %v676 = vshrl.u32 %v675, 7
      %v677 = vsub.s32 0, %v676
      %v678 = vrot.slane %v641, %v677
      %v679 = vlaneseq
      %v680 = vshrl.u32 %v679, 7
      %v681 = vsub.s32 1, %v680
      %v682 = vrot.slane %v641, %v681
      %v685 = vmul.f32 %v644, %v678
      %v686 = vmul.f32 %v644, %v682
      %v687 = vmul.f32 %v648, %v678
      %v688 = vmul.f32 %v648, %v682
      %v689 = vmul.f32 %v652, %v678
      %v690 = vmul.f32 %v652, %v682
      %v691 = vmul.f32 %v656, %v678
      %v692 = vmul.f32 %v656, %v682
      %v693 = vmul.f32 %v660, %v678
      %v694 = vmul.f32 %v660, %v682
      %v695 = vmul.f32 %v664, %v678
      %v696 = vmul.f32 %v664, %v682
      %v697 = vmul.f32 %v668, %v678
      %v698 = vmul.f32 %v668, %v682
      %v699 = vmul.f32 %v672, %v678
      %v700 = vmul.f32 %v672, %v682
      %v701 = vadd.f32 %v624, %v685
      %v702 = vadd.f32 %v625, %v686
      %v703 = vadd.f32 %v626, %v687
      %v704 = vadd.f32 %v627, %v688
      %v705 = vadd.f32 %v628, %v689
      %v706 = vadd.f32 %v629, %v690
      %v707 = vadd.f32 %v630, %v691
      %v708 = vadd.f32 %v631, %v692
      %v709 = vadd.f32 %v632, %v693
      %v710 = vadd.f32 %v633, %v694
      %v711 = vadd.f32 %v634, %v695
      %v712 = vadd.f32 %v635, %v696
      %v713 = vadd.f32 %v636, %v697
      %v714 = vadd.f32 %v637, %v698
      %v715 = vadd.f32 %v638, %v699
      %v716 = vadd.f32 %v639, %v700
      %s717 = scalar_lea.vmem %s5, 39
      %v718 = vld [vmem:[%s717] ss:$8 sm:$0x3]
      %719 = vset.pattern.permute.xlu0 111
      %720 = vperm.xlu0 %719, %v486
      %v721 = vpop.permute.xlu0 %720
      %723 = vset.pattern.permute.xlu0 111
      %724 = vperm.xlu0 %723, %v487
      %v725 = vpop.permute.xlu0 %724
      %727 = vset.pattern.permute.xlu0 111
      %728 = vperm.xlu0 %727, %v488
      %v729 = vpop.permute.xlu0 %728
      %731 = vset.pattern.permute.xlu0 111
      %732 = vperm.xlu0 %731, %v489
      %v733 = vpop.permute.xlu0 %732
      %735 = vset.pattern.permute.xlu0 111
      %736 = vperm.xlu0 %735, %v490
      %v737 = vpop.permute.xlu0 %736
      %739 = vset.pattern.permute.xlu0 111
      %740 = vperm.xlu0 %739, %v491
      %v741 = vpop.permute.xlu0 %740
      %743 = vset.pattern.permute.xlu0 111
      %744 = vperm.xlu0 %743, %v492
      %v745 = vpop.permute.xlu0 %744
      %747 = vset.pattern.permute.xlu0 111
      %748 = vperm.xlu0 %747, %v493
      %v749 = vpop.permute.xlu0 %748
      %v752 = vlaneseq
      %v753 = vshrl.u32 %v752, 7
      %v754 = vsub.s32 0, %v753
      %v755 = vrot.slane %v718, %v754
      %v756 = vlaneseq
      %v757 = vshrl.u32 %v756, 7
      %v758 = vsub.s32 1, %v757
      %v759 = vrot.slane %v718, %v758
      %v762 = vmul.f32 %v721, %v755
      %v763 = vmul.f32 %v721, %v759
      %v764 = vmul.f32 %v725, %v755
      %v765 = vmul.f32 %v725, %v759
      %v766 = vmul.f32 %v729, %v755
      %v767 = vmul.f32 %v729, %v759
      %v768 = vmul.f32 %v733, %v755
      %v769 = vmul.f32 %v733, %v759
      %v770 = vmul.f32 %v737, %v755
      %v771 = vmul.f32 %v737, %v759
      %v772 = vmul.f32 %v741, %v755
      %v773 = vmul.f32 %v741, %v759
      %v774 = vmul.f32 %v745, %v755
      %v775 = vmul.f32 %v745, %v759
      %v776 = vmul.f32 %v749, %v755
      %v777 = vmul.f32 %v749, %v759
      %v778 = vadd.f32 %v701, %v762
      %v779 = vadd.f32 %v702, %v763
      %v780 = vadd.f32 %v703, %v764
      %v781 = vadd.f32 %v704, %v765
      %v782 = vadd.f32 %v705, %v766
      %v783 = vadd.f32 %v706, %v767
      %v784 = vadd.f32 %v707, %v768
      %v785 = vadd.f32 %v708, %v769
      %v786 = vadd.f32 %v709, %v770
      %v787 = vadd.f32 %v710, %v771
      %v788 = vadd.f32 %v711, %v772
      %v789 = vadd.f32 %v712, %v773
      %v790 = vadd.f32 %v713, %v774
      %v791 = vadd.f32 %v714, %v775
      %v792 = vadd.f32 %v715, %v776
      %v793 = vadd.f32 %v716, %v777
      %vm794 = vcmp.gt.f32.partialorder %v778, 0.0
      %vm795 = vcmp.gt.f32.partialorder %v779, 0.0
      %vm796 = vcmp.gt.f32.partialorder %v780, 0.0
      %vm797 = vcmp.gt.f32.partialorder %v781, 0.0
      %vm798 = vcmp.gt.f32.partialorder %v782, 0.0
      %vm799 = vcmp.gt.f32.partialorder %v783, 0.0
      %vm800 = vcmp.gt.f32.partialorder %v784, 0.0
      %vm801 = vcmp.gt.f32.partialorder %v785, 0.0
      %vm802 = vcmp.gt.f32.partialorder %v786, 0.0
      %vm803 = vcmp.gt.f32.partialorder %v787, 0.0
      %vm804 = vcmp.gt.f32.partialorder %v788, 0.0
      %vm805 = vcmp.gt.f32.partialorder %v789, 0.0
      %vm806 = vcmp.gt.f32.partialorder %v790, 0.0
      %vm807 = vcmp.gt.f32.partialorder %v791, 0.0
      %vm808 = vcmp.gt.f32.partialorder %v792, 0.0
      %vm809 = vcmp.gt.f32.partialorder %v793, 0.0
      %v810 = vsel %vm794, 0.0, %v470
      %v811 = vsel %vm795, 0.0, %v471
      %v812 = vsel %vm796, 0.0, %v472
      %v813 = vsel %vm797, 0.0, %v473
      %v814 = vsel %vm798, 0.0, %v474
      %v815 = vsel %vm799, 0.0, %v475
      %v816 = vsel %vm800, 0.0, %v476
      %v817 = vsel %vm801, 0.0, %v477
      %v818 = vsel %vm802, 0.0, %v478
      %v819 = vsel %vm803, 0.0, %v479
      %v820 = vsel %vm804, 0.0, %v480
      %v821 = vsel %vm805, 0.0, %v481
      %v822 = vsel %vm806, 0.0, %v482
      %v823 = vsel %vm807, 0.0, %v483
      %v824 = vsel %vm808, 0.0, %v484
      %v825 = vsel %vm809, 0.0, %v485
      %v826 = vpack.c.bf16 %v812, %v810
      %v827 = vpack.c.bf16 %v813, %v811
      %v828 = vpack.c.bf16 %v816, %v814
      %v829 = vpack.c.bf16 %v817, %v815
      %v830 = vpack.c.bf16 %v820, %v818
      %v831 = vpack.c.bf16 %v821, %v819
      %v832 = vpack.c.bf16 %v824, %v822
      %v833 = vpack.c.bf16 %v825, %v823
      %v834 = vld [vmem:[%s2] sm:$0xf]
      %v835 = vld [vmem:[%s2 + $0x4] sm:$0xf]
      %v836 = vld [vmem:[%s2 + $0x8] sm:$0xf]
      %v837 = vld [vmem:[%s2 + $0xc] sm:$0xf]
      %v838 = vld [vmem:[%s2 + $0x10] sm:$0xf]
      %v839 = vld [vmem:[%s2 + $0x14] sm:$0xf]
      %v840 = vld [vmem:[%s2 + $0x18] sm:$0xf]
      %v841 = vld [vmem:[%s2 + $0x1c] sm:$0xf]
      %v842 = vld [vmem:[%s2 + $0x20] sm:$0xf]
      %v843 = vld [vmem:[%s2 + $0x24] sm:$0xf]
      %v844 = vld [vmem:[%s2 + $0x28] sm:$0xf]
      %v845 = vld [vmem:[%s2 + $0x2c] sm:$0xf]
      %v846 = vld [vmem:[%s2 + $0x30] sm:$0xf]
      %v847 = vld [vmem:[%s2 + $0x34] sm:$0xf]
      %v848 = vld [vmem:[%s2 + $0x38] sm:$0xf]
      %v849 = vld [vmem:[%s2 + $0x3c] sm:$0xf]
      %v850 = vld [vmem:[%s2 + $0x40] sm:$0xf]
      %v851 = vld [vmem:[%s2 + $0x44] sm:$0xf]
      %v852 = vld [vmem:[%s2 + $0x48] sm:$0xf]
      %v853 = vld [vmem:[%s2 + $0x4c] sm:$0xf]
      %v854 = vld [vmem:[%s2 + $0x50] sm:$0xf]
      %v855 = vld [vmem:[%s2 + $0x54] sm:$0xf]
      %v856 = vld [vmem:[%s2 + $0x58] sm:$0xf]
      %v857 = vld [vmem:[%s2 + $0x5c] sm:$0xf]
      %v858 = vld [vmem:[%s2 + $0x60] sm:$0xf]
      %v859 = vld [vmem:[%s2 + $0x64] sm:$0xf]
      %v860 = vld [vmem:[%s2 + $0x68] sm:$0xf]
      %v861 = vld [vmem:[%s2 + $0x6c] sm:$0xf]
      %v862 = vld [vmem:[%s2 + $0x70] sm:$0xf]
      %v863 = vld [vmem:[%s2 + $0x74] sm:$0xf]
      %v864 = vld [vmem:[%s2 + $0x78] sm:$0xf]
      %v865 = vld [vmem:[%s2 + $0x7c] sm:$0xf]
      %v866 = vld [vmem:[%s5 + $0x2] ss:$0 sm:$0xff]
      %v899 = vunpack.c.l.b16 %v834
      %v900 = vunpack.c.l.b16 %v835
      %v901 = vunpack.c.l.b16 %v836
      %v902 = vunpack.c.l.b16 %v837
      %v903 = vunpack.c.l.b16 %v838
      %v904 = vunpack.c.l.b16 %v839
      %v905 = vunpack.c.l.b16 %v840
      %v906 = vunpack.c.l.b16 %v841
      %v907 = vunpack.c.l.b16 %v842
      %v908 = vunpack.c.l.b16 %v843
      %v909 = vunpack.c.l.b16 %v844
      %v910 = vunpack.c.l.b16 %v845
      %v911 = vunpack.c.l.b16 %v846
      %v912 = vunpack.c.l.b16 %v847
      %v913 = vunpack.c.l.b16 %v848
      %v914 = vunpack.c.l.b16 %v849
      %v915 = vunpack.c.l.b16 %v850
      %v916 = vunpack.c.l.b16 %v851
      %v917 = vunpack.c.l.b16 %v852
      %v918 = vunpack.c.l.b16 %v853
      %v919 = vunpack.c.l.b16 %v854
      %v920 = vunpack.c.l.b16 %v855
      %v921 = vunpack.c.l.b16 %v856
      %v922 = vunpack.c.l.b16 %v857
      %v923 = vunpack.c.l.b16 %v858
      %v924 = vunpack.c.l.b16 %v859
      %v925 = vunpack.c.l.b16 %v860
      %v926 = vunpack.c.l.b16 %v861
      %v927 = vunpack.c.l.b16 %v862
      %v928 = vunpack.c.l.b16 %v863
      %v929 = vunpack.c.l.b16 %v864
      %v930 = vunpack.c.l.b16 %v865
      %v931 = vpack.c.b16 %v900, %v899
      %v932 = vpack.c.b16 %v902, %v901
      %v933 = vpack.c.b16 %v904, %v903
      %v934 = vpack.c.b16 %v906, %v905
      %v935 = vpack.c.b16 %v908, %v907
      %v936 = vpack.c.b16 %v910, %v909
      %v937 = vpack.c.b16 %v912, %v911
      %v938 = vpack.c.b16 %v914, %v913
      %v939 = vpack.c.b16 %v916, %v915
      %v940 = vpack.c.b16 %v918, %v917
      %v941 = vpack.c.b16 %v920, %v919
      %v942 = vpack.c.b16 %v922, %v921
      %v943 = vpack.c.b16 %v924, %v923
      %v944 = vpack.c.b16 %v926, %v925
      %v945 = vpack.c.b16 %v928, %v927
      %v946 = vpack.c.b16 %v930, %v929
      %963 = vmatprep.subr.bf16.mxu0 0
      %964 = vmatpush1.bf16.msra.mxu0 %v931
      %965 = vmatprep.subr.bf16.mxu0 0
      %966 = vmatpush1.bf16.msra.mxu0 %v932
      %967 = vmatprep.subr.bf16.mxu0 0
      %968 = vmatpush1.bf16.msra.mxu0 %v933
      %969 = vmatprep.subr.bf16.mxu0 0
      %970 = vmatpush1.bf16.msra.mxu0 %v934
      %971 = vmatprep.subr.bf16.mxu0 0
      %972 = vmatpush1.bf16.msra.mxu0 %v935
      %973 = vmatprep.subr.bf16.mxu0 0
      %974 = vmatpush1.bf16.msra.mxu0 %v936
      %975 = vmatprep.subr.bf16.mxu0 0
      %976 = vmatpush1.bf16.msra.mxu0 %v937
      %977 = vmatprep.subr.bf16.mxu0 0
      %978 = vmatpush1.bf16.msra.mxu0 %v938
      %979 = vmatprep.subr.bf16.mxu0 0
      %980 = vmatpush1.bf16.msra.mxu0 %v939
      %981 = vmatprep.subr.bf16.mxu0 0
      %982 = vmatpush1.bf16.msra.mxu0 %v940
      %983 = vmatprep.subr.bf16.mxu0 0
      %984 = vmatpush1.bf16.msra.mxu0 %v941
      %985 = vmatprep.subr.bf16.mxu0 0
      %986 = vmatpush1.bf16.msra.mxu0 %v942
      %987 = vmatprep.subr.bf16.mxu0 0
      %988 = vmatpush1.bf16.msra.mxu0 %v943
      %989 = vmatprep.subr.bf16.mxu0 0
      %990 = vmatpush1.bf16.msra.mxu0 %v944
      %991 = vmatprep.subr.bf16.mxu0 0
      %992 = vmatpush1.bf16.msra.mxu0 %v945
      %993 = vmatprep.subr.bf16.mxu0 0
      %994 = vmatpush1.bf16.msra.mxu0 %v946
      %995 = vmatprep.mubr.bf16.mxu0 %v827
      %996 = vmatmul.mubr.bf16.gmra.mrb[0].mxu0 %v826
      %v997 = vpop.f32.mrb[0].mxu0
      %v998 = vadd.f32 %v866, %v997
      %v999 = vpop.f32.mrb[0].mxu0
      %v1000 = vpop.f32.mrb[0].mxu0
      %v1001 = vadd.f32 %v866, %v1000
      %v1002 = vpop.f32.mrb[0].mxu0
      %1003 = vmatprep.mubr.bf16.mxu0 %v829
      %1004 = vmatmul.mubr.bf16.gmra.mrb[0].mxu0 %v828
      %v1005 = vpop.f32.mrb[0].mxu0
      %v1006 = vadd.f32 %v866, %v1005
      %v1007 = vpop.f32.mrb[0].mxu0
      %v1008 = vpop.f32.mrb[0].mxu0
      %v1009 = vadd.f32 %v866, %v1008
      %v1010 = vpop.f32.mrb[0].mxu0
      %1011 = vmatprep.mubr.bf16.mxu0 %v831
      %1012 = vmatmul.mubr.bf16.gmra.mrb[0].mxu0 %v830
      %v1013 = vpop.f32.mrb[0].mxu0
      %v1014 = vadd.f32 %v866, %v1013
      %v1015 = vpop.f32.mrb[0].mxu0
      %v1016 = vpop.f32.mrb[0].mxu0
      %v1017 = vadd.f32 %v866, %v1016
      %v1018 = vpop.f32.mrb[0].mxu0
      %1019 = vmatprep.mubr.bf16.mxu0 %v833
      %1020 = vmatmul.mubr.bf16.gmra.mrb[0].mxu0 %v832
      %v1021 = vpop.f32.mrb[0].mxu0
      %v1022 = vadd.f32 %v866, %v1021
      %v1023 = vpop.f32.mrb[0].mxu0
      %v1024 = vpop.f32.mrb[0].mxu0
      %v1025 = vadd.f32 %v866, %v1024
      %v1026 = vpop.f32.mrb[0].mxu0
      %1027 = vdwg.mxu0
      %v1028 = vmax.f32 %v998, 0.0
      %v1029 = vmax.f32 %v1001, 0.0
      %v1030 = vmax.f32 %v1006, 0.0
      %v1031 = vmax.f32 %v1009, 0.0
      %v1032 = vmax.f32 %v1014, 0.0
      %v1033 = vmax.f32 %v1017, 0.0
      %v1034 = vmax.f32 %v1022, 0.0
      %v1035 = vmax.f32 %v1025, 0.0
      %1044 = vrot.lane.b32.xlu0 %v1028, 124
      %v1045 = vpop.permute.xlu0 %1044
      %1046 = vrot.lane.b32.xlu0 %v1029, 124
      %v1047 = vpop.permute.xlu0 %1046
      %1048 = vrot.lane.b32.xlu0 %v1030, 124
      %v1049 = vpop.permute.xlu0 %1048
      %1050 = vrot.lane.b32.xlu0 %v1031, 124
      %v1051 = vpop.permute.xlu0 %1050
      %1052 = vrot.lane.b32.xlu0 %v1032, 124
      %v1053 = vpop.permute.xlu0 %1052
      %1054 = vrot.lane.b32.xlu0 %v1033, 124
      %v1055 = vpop.permute.xlu0 %1054
      %1056 = vrot.lane.b32.xlu0 %v1034, 124
      %v1057 = vpop.permute.xlu0 %1056
      %1058 = vrot.lane.b32.xlu0 %v1035, 124
      %v1059 = vpop.permute.xlu0 %1058
      %v1068 = vmax.f32 %v1028, %v1045
      %v1069 = vmax.f32 %v1029, %v1047
      %v1070 = vmax.f32 %v1030, %v1049
      %v1071 = vmax.f32 %v1031, %v1051
      %v1072 = vmax.f32 %v1032, %v1053
      %v1073 = vmax.f32 %v1033, %v1055
      %v1074 = vmax.f32 %v1034, %v1057
      %v1075 = vmax.f32 %v1035, %v1059
      %1084 = vrot.lane.b32.xlu0 %v1068, 120
      %v1085 = vpop.permute.xlu0 %1084
      %1086 = vrot.lane.b32.xlu0 %v1069, 120
      %v1087 = vpop.permute.xlu0 %1086
      %1088 = vrot.lane.b32.xlu0 %v1070, 120
      %v1089 = vpop.permute.xlu0 %1088
      %1090 = vrot.lane.b32.xlu0 %v1071, 120
      %v1091 = vpop.permute.xlu0 %1090
      %1092 = vrot.lane.b32.xlu0 %v1072, 120
      %v1093 = vpop.permute.xlu0 %1092
      %1094 = vrot.lane.b32.xlu0 %v1073, 120
      %v1095 = vpop.permute.xlu0 %1094
      %1096 = vrot.lane.b32.xlu0 %v1074, 120
      %v1097 = vpop.permute.xlu0 %1096
      %1098 = vrot.lane.b32.xlu0 %v1075, 120
      %v1099 = vpop.permute.xlu0 %1098
      %v1108 = vmax.f32 %v1068, %v1085
      %v1109 = vmax.f32 %v1069, %v1087
      %v1110 = vmax.f32 %v1070, %v1089
      %v1111 = vmax.f32 %v1071, %v1091
      %v1112 = vmax.f32 %v1072, %v1093
      %v1113 = vmax.f32 %v1073, %v1095
      %v1114 = vmax.f32 %v1074, %v1097
      %v1115 = vmax.f32 %v1075, %v1099
      %v1116 = vld [vmem:[%s5 + $0x4] ss:$0 sm:$0xff]
      %v1117 = vld [vmem:[%s5 + $0x20] ss:$0 sm:$0xff]
      %1119 = vset.pattern.permute.xlu0 0
      %1120 = vperm.xlu0 %1119, %v1108
      %v1121 = vpop.permute.xlu0 %1120
      %1124 = vset.pattern.permute.xlu0 0
      %1125 = vperm.xlu0 %1124, %v1109
      %v1126 = vpop.permute.xlu0 %1125
      %1129 = vset.pattern.permute.xlu0 0
      %1130 = vperm.xlu0 %1129, %v1110
      %v1131 = vpop.permute.xlu0 %1130
      %1134 = vset.pattern.permute.xlu0 0
      %1135 = vperm.xlu0 %1134, %v1111
      %v1136 = vpop.permute.xlu0 %1135
      %1139 = vset.pattern.permute.xlu0 0
      %1140 = vperm.xlu0 %1139, %v1112
      %v1141 = vpop.permute.xlu0 %1140
      %1144 = vset.pattern.permute.xlu0 0
      %1145 = vperm.xlu0 %1144, %v1113
      %v1146 = vpop.permute.xlu0 %1145
      %1149 = vset.pattern.permute.xlu0 0
      %1150 = vperm.xlu0 %1149, %v1114
      %v1151 = vpop.permute.xlu0 %1150
      %1154 = vset.pattern.permute.xlu0 0
      %1155 = vperm.xlu0 %1154, %v1115
      %v1156 = vpop.permute.xlu0 %1155
      %v1158 = vmul.f32 %v1121, %v1117
      %v1159 = vmul.f32 %v1126, %v1117
      %v1160 = vmul.f32 %v1131, %v1117
      %v1161 = vmul.f32 %v1136, %v1117
      %v1162 = vmul.f32 %v1141, %v1117
      %v1163 = vmul.f32 %v1146, %v1117
      %v1164 = vmul.f32 %v1151, %v1117
      %v1165 = vmul.f32 %v1156, %v1117
      %v1166 = vadd.f32 %v1116, %v1158
      %v1167 = vadd.f32 %v1116, %v1159
      %v1168 = vadd.f32 %v1116, %v1160
      %v1169 = vadd.f32 %v1116, %v1161
      %v1170 = vadd.f32 %v1116, %v1162
      %v1171 = vadd.f32 %v1116, %v1163
      %v1172 = vadd.f32 %v1116, %v1164
      %v1173 = vadd.f32 %v1116, %v1165
      %v1174 = vld [vmem:[%s5 + $0x21] ss:$0 sm:$0xff]
      %1175 = vset.pattern.permute.xlu0 1
      %1176 = vperm.xlu0 %1175, %v1108
      %v1177 = vpop.permute.xlu0 %1176
      %1179 = vset.pattern.permute.xlu0 1
      %1180 = vperm.xlu0 %1179, %v1109
      %v1181 = vpop.permute.xlu0 %1180
      %1183 = vset.pattern.permute.xlu0 1
      %1184 = vperm.xlu0 %1183, %v1110
      %v1185 = vpop.permute.xlu0 %1184
      %1187 = vset.pattern.permute.xlu0 1
      %1188 = vperm.xlu0 %1187, %v1111
      %v1189 = vpop.permute.xlu0 %1188
      %1191 = vset.pattern.permute.xlu0 1
      %1192 = vperm.xlu0 %1191, %v1112
      %v1193 = vpop.permute.xlu0 %1192
      %1195 = vset.pattern.permute.xlu0 1
      %1196 = vperm.xlu0 %1195, %v1113
      %v1197 = vpop.permute.xlu0 %1196
      %1199 = vset.pattern.permute.xlu0 1
      %1200 = vperm.xlu0 %1199, %v1114
      %v1201 = vpop.permute.xlu0 %1200
      %1203 = vset.pattern.permute.xlu0 1
      %1204 = vperm.xlu0 %1203, %v1115
      %v1205 = vpop.permute.xlu0 %1204
      %v1207 = vmul.f32 %v1177, %v1174
      %v1208 = vmul.f32 %v1181, %v1174
      %v1209 = vmul.f32 %v1185, %v1174
      %v1210 = vmul.f32 %v1189, %v1174
      %v1211 = vmul.f32 %v1193, %v1174
      %v1212 = vmul.f32 %v1197, %v1174
      %v1213 = vmul.f32 %v1201, %v1174
      %v1214 = vmul.f32 %v1205, %v1174
      %v1215 = vadd.f32 %v1166, %v1207
      %v1216 = vadd.f32 %v1167, %v1208
      %v1217 = vadd.f32 %v1168, %v1209
      %v1218 = vadd.f32 %v1169, %v1210
      %v1219 = vadd.f32 %v1170, %v1211
      %v1220 = vadd.f32 %v1171, %v1212
      %v1221 = vadd.f32 %v1172, %v1213
      %v1222 = vadd.f32 %v1173, %v1214
      %v1223 = vld [vmem:[%s5 + $0x22] ss:$0 sm:$0xff]
      %1224 = vset.pattern.permute.xlu0 2
      %1225 = vperm.xlu0 %1224, %v1108
      %v1226 = vpop.permute.xlu0 %1225
      %1228 = vset.pattern.permute.xlu0 2
      %1229 = vperm.xlu0 %1228, %v1109
      %v1230 = vpop.permute.xlu0 %1229
      %1232 = vset.pattern.permute.xlu0 2
      %1233 = vperm.xlu0 %1232, %v1110
      %v1234 = vpop.permute.xlu0 %1233
      %1236 = vset.pattern.permute.xlu0 2
      %1237 = vperm.xlu0 %1236, %v1111
      %v1238 = vpop.permute.xlu0 %1237
      %1240 = vset.pattern.permute.xlu0 2
      %1241 = vperm.xlu0 %1240, %v1112
      %v1242 = vpop.permute.xlu0 %1241
      %1244 = vset.pattern.permute.xlu0 2
      %1245 = vperm.xlu0 %1244, %v1113
      %v1246 = vpop.permute.xlu0 %1245
      %1248 = vset.pattern.permute.xlu0 2
      %1249 = vperm.xlu0 %1248, %v1114
      %v1250 = vpop.permute.xlu0 %1249
      %1252 = vset.pattern.permute.xlu0 2
      %1253 = vperm.xlu0 %1252, %v1115
      %v1254 = vpop.permute.xlu0 %1253
      %v1256 = vmul.f32 %v1226, %v1223
      %v1257 = vmul.f32 %v1230, %v1223
      %v1258 = vmul.f32 %v1234, %v1223
      %v1259 = vmul.f32 %v1238, %v1223
      %v1260 = vmul.f32 %v1242, %v1223
      %v1261 = vmul.f32 %v1246, %v1223
      %v1262 = vmul.f32 %v1250, %v1223
      %v1263 = vmul.f32 %v1254, %v1223
      %v1264 = vadd.f32 %v1215, %v1256
      %v1265 = vadd.f32 %v1216, %v1257
      %v1266 = vadd.f32 %v1217, %v1258
      %v1267 = vadd.f32 %v1218, %v1259
      %v1268 = vadd.f32 %v1219, %v1260
      %v1269 = vadd.f32 %v1220, %v1261
      %v1270 = vadd.f32 %v1221, %v1262
      %v1271 = vadd.f32 %v1222, %v1263
      %v1272 = vld [vmem:[%s5 + $0x23] ss:$0 sm:$0xff]
      %1273 = vset.pattern.permute.xlu0 3
      %1274 = vperm.xlu0 %1273, %v1108
      %v1275 = vpop.permute.xlu0 %1274
      %1277 = vset.pattern.permute.xlu0 3
      %1278 = vperm.xlu0 %1277, %v1109
      %v1279 = vpop.permute.xlu0 %1278
      %1281 = vset.pattern.permute.xlu0 3
      %1282 = vperm.xlu0 %1281, %v1110
      %v1283 = vpop.permute.xlu0 %1282
      %1285 = vset.pattern.permute.xlu0 3
      %1286 = vperm.xlu0 %1285, %v1111
      %v1287 = vpop.permute.xlu0 %1286
      %1289 = vset.pattern.permute.xlu0 3
      %1290 = vperm.xlu0 %1289, %v1112
      %v1291 = vpop.permute.xlu0 %1290
      %1293 = vset.pattern.permute.xlu0 3
      %1294 = vperm.xlu0 %1293, %v1113
      %v1295 = vpop.permute.xlu0 %1294
      %1297 = vset.pattern.permute.xlu0 3
      %1298 = vperm.xlu0 %1297, %v1114
      %v1299 = vpop.permute.xlu0 %1298
      %1301 = vset.pattern.permute.xlu0 3
      %1302 = vperm.xlu0 %1301, %v1115
      %v1303 = vpop.permute.xlu0 %1302
      %v1305 = vmul.f32 %v1275, %v1272
      %v1306 = vmul.f32 %v1279, %v1272
      %v1307 = vmul.f32 %v1283, %v1272
      %v1308 = vmul.f32 %v1287, %v1272
      %v1309 = vmul.f32 %v1291, %v1272
      %v1310 = vmul.f32 %v1295, %v1272
      %v1311 = vmul.f32 %v1299, %v1272
      %v1312 = vmul.f32 %v1303, %v1272
      %v1313 = vadd.f32 %v1264, %v1305
      %v1314 = vadd.f32 %v1265, %v1306
      %v1315 = vadd.f32 %v1266, %v1307
      %v1316 = vadd.f32 %v1267, %v1308
      %v1317 = vadd.f32 %v1268, %v1309
      %v1318 = vadd.f32 %v1269, %v1310
      %v1319 = vadd.f32 %v1270, %v1311
      %v1320 = vadd.f32 %v1271, %v1312
      %v1321 = vmax.f32 %v1313, 0.0
      %v1322 = vmax.f32 %v1314, 0.0
      %v1323 = vmax.f32 %v1315, 0.0
      %v1324 = vmax.f32 %v1316, 0.0
      %v1325 = vmax.f32 %v1317, 0.0
      %v1326 = vmax.f32 %v1318, 0.0
      %v1327 = vmax.f32 %v1319, 0.0
      %v1328 = vmax.f32 %v1320, 0.0
      %v1329 = vpack.c.bf16 %v1322, %v1321
      %v1330 = vpack.c.bf16 %v1324, %v1323
      %v1331 = vpack.c.bf16 %v1326, %v1325
      %v1332 = vpack.c.bf16 %v1328, %v1327
      %v1333 = vld [vmem:[%s3] sm:$0xff]
      %v1334 = vld [vmem:[%s3 + $0x8] sm:$0xff]
      %v1335 = vld [vmem:[%s3 + $0x10] sm:$0xff]
      %v1336 = vld [vmem:[%s3 + $0x18] sm:$0xff]
      %v1337 = vld [vmem:[%s3 + $0x20] sm:$0xff]
      %v1338 = vld [vmem:[%s3 + $0x28] sm:$0xff]
      %v1339 = vld [vmem:[%s3 + $0x30] sm:$0xff]
      %v1340 = vld [vmem:[%s3 + $0x38] sm:$0xff]
      %v1341 = vld [vmem:[%s3 + $0x40] sm:$0xff]
      %v1342 = vld [vmem:[%s3 + $0x48] sm:$0xff]
      %v1343 = vld [vmem:[%s3 + $0x50] sm:$0xff]
      %v1344 = vld [vmem:[%s3 + $0x58] sm:$0xff]
      %v1345 = vld [vmem:[%s3 + $0x60] sm:$0xff]
      %v1346 = vld [vmem:[%s3 + $0x68] sm:$0xff]
      %v1347 = vld [vmem:[%s3 + $0x70] sm:$0xff]
      %v1348 = vld [vmem:[%s3 + $0x78] sm:$0xff]
      %v1349 = vld [vmem:[%s5] ss:$8 sm:$0xf]
      %v1351 = vlaneseq
      %v1352 = vshrl.u32 %v1351, 7
      %v1353 = vsub.s32 0, %v1352
      %v1354 = vrot.slane %v1349, %v1353
      %v1355 = vlaneseq
      %v1356 = vshrl.u32 %v1355, 7
      %v1357 = vsub.s32 1, %v1356
      %v1358 = vrot.slane %v1349, %v1357
      %v1359 = vlaneseq
      %v1360 = vshrl.u32 %v1359, 7
      %v1361 = vsub.s32 2, %v1360
      %v1362 = vrot.slane %v1349, %v1361
      %v1363 = vlaneseq
      %v1364 = vshrl.u32 %v1363, 7
      %v1365 = vsub.s32 3, %v1364
      %v1366 = vrot.slane %v1349, %v1365
      %v1387 = vunpack.c.l.b16 %v1333
      %v1388 = vunpack.c.h.b16 %v1333
      %v1389 = vunpack.c.l.b16 %v1334
      %v1390 = vunpack.c.h.b16 %v1334
      %v1391 = vunpack.c.l.b16 %v1335
      %v1392 = vunpack.c.h.b16 %v1335
      %v1393 = vunpack.c.l.b16 %v1336
      %v1394 = vunpack.c.h.b16 %v1336
      %v1395 = vunpack.c.l.b16 %v1337
      %v1396 = vunpack.c.h.b16 %v1337
      %v1397 = vunpack.c.l.b16 %v1338
      %v1398 = vunpack.c.h.b16 %v1338
      %v1399 = vunpack.c.l.b16 %v1339
      %v1400 = vunpack.c.h.b16 %v1339
      %v1401 = vunpack.c.l.b16 %v1340
      %v1402 = vunpack.c.h.b16 %v1340
      %v1403 = vunpack.c.l.b16 %v1341
      %v1404 = vunpack.c.h.b16 %v1341
      %v1405 = vunpack.c.l.b16 %v1342
      %v1406 = vunpack.c.h.b16 %v1342
      %v1407 = vunpack.c.l.b16 %v1343
      %v1408 = vunpack.c.h.b16 %v1343
      %v1409 = vunpack.c.l.b16 %v1344
      %v1410 = vunpack.c.h.b16 %v1344
      %v1411 = vunpack.c.l.b16 %v1345
      %v1412 = vunpack.c.h.b16 %v1345
      %v1413 = vunpack.c.l.b16 %v1346
      %v1414 = vunpack.c.h.b16 %v1346
      %v1415 = vunpack.c.l.b16 %v1347
      %v1416 = vunpack.c.h.b16 %v1347
      %v1417 = vunpack.c.l.b16 %v1348
      %v1418 = vunpack.c.h.b16 %v1348
      %v1419 = vpack.c.b16 %v1391, %v1387
      %v1420 = vpack.c.b16 %v1392, %v1388
      %v1421 = vpack.c.b16 %v1393, %v1389
      %v1422 = vpack.c.b16 %v1394, %v1390
      %v1423 = vpack.c.b16 %v1399, %v1395
      %v1424 = vpack.c.b16 %v1400, %v1396
      %v1425 = vpack.c.b16 %v1401, %v1397
      %v1426 = vpack.c.b16 %v1402, %v1398
      %v1427 = vpack.c.b16 %v1407, %v1403
      %v1428 = vpack.c.b16 %v1408, %v1404
      %v1429 = vpack.c.b16 %v1409, %v1405
      %v1430 = vpack.c.b16 %v1410, %v1406
      %v1431 = vpack.c.b16 %v1415, %v1411
      %v1432 = vpack.c.b16 %v1416, %v1412
      %v1433 = vpack.c.b16 %v1417, %v1413
      %v1434 = vpack.c.b16 %v1418, %v1414
      %vm1451 = vcmask 523264
      %v1453 = vsel %vm1451, %v1329, 0
      %v1456 = vsel %vm1451, %v1330, 0
      %v1459 = vsel %vm1451, %v1331, 0
      %v1462 = vsel %vm1451, %v1332, 0
      %1464 = vmatprep.subr.bf16.mxu0 %v1420
      %1465 = vmatpush1.bf16.msra.mxu0 %v1419
      %1466 = vmatprep.subr.bf16.mxu0 %v1424
      %1467 = vmatpush1.bf16.msra.mxu0 %v1423
      %1468 = vmatprep.subr.bf16.mxu0 %v1428
      %1469 = vmatpush1.bf16.msra.mxu0 %v1427
      %1470 = vmatprep.subr.bf16.mxu0 %v1432
      %1471 = vmatpush1.bf16.msra.mxu0 %v1431
      %1472 = vmatprep.subr.bf16.mxu0 0
      %1473 = vmatpush1.bf16.msra.mxu0 0
      %1474 = vmatprep.subr.bf16.mxu0 0
      %1475 = vmatpush1.bf16.msra.mxu0 0
      %1476 = vmatprep.subr.bf16.mxu0 0
      %1477 = vmatpush1.bf16.msra.mxu0 0
      %1478 = vmatprep.subr.bf16.mxu0 0
      %1479 = vmatpush1.bf16.msra.mxu0 0
      %1480 = vmatprep.subr.bf16.mxu0 0
      %1481 = vmatpush1.bf16.msra.mxu0 0
      %1482 = vmatprep.subr.bf16.mxu0 0
      %1483 = vmatpush1.bf16.msra.mxu0 0
      %1484 = vmatprep.subr.bf16.mxu0 0
      %1485 = vmatpush1.bf16.msra.mxu0 0
      %1486 = vmatprep.subr.bf16.mxu0 0
      %1487 = vmatpush1.bf16.msra.mxu0 0
      %1488 = vmatprep.subr.bf16.mxu0 0
      %1489 = vmatpush1.bf16.msra.mxu0 0
      %1490 = vmatprep.subr.bf16.mxu0 0
      %1491 = vmatpush1.bf16.msra.mxu0 0
      %1492 = vmatprep.subr.bf16.mxu0 0
      %1493 = vmatpush1.bf16.msra.mxu0 0
      %1494 = vmatprep.subr.bf16.mxu0 0
      %1495 = vmatpush1.bf16.msra.mxu0 0
      %1496 = vmatprep.mubr.bf16.mxu0 0
      %1497 = vmatmul.mubr.bf16.gmra.mrb[0].mxu0 %v1453
      %v1498 = vpop.f32.mrb[0].mxu0
      %v1499 = vadd.f32 %v1354, %v1498
      %v1500 = vpop.f32.mrb[0].mxu0
      %v1501 = vadd.f32 %v1358, %v1500
      %v1502 = vpop.f32.mrb[0].mxu0
      %v1503 = vadd.f32 %v1354, %v1502
      %v1504 = vpop.f32.mrb[0].mxu0
      %v1505 = vadd.f32 %v1358, %v1504
      %1506 = vmatprep.mubr.bf16.mxu0 0
      %1507 = vmatmul.mubr.bf16.gmra.mrb[0].mxu0 %v1456
      %v1508 = vpop.f32.mrb[0].mxu0
      %v1509 = vadd.f32 %v1354, %v1508
      %v1510 = vpop.f32.mrb[0].mxu0
      %v1511 = vadd.f32 %v1358, %v1510
      %v1512 = vpop.f32.mrb[0].mxu0
      %v1513 = vadd.f32 %v1354, %v1512
      %v1514 = vpop.f32.mrb[0].mxu0
      %v1515 = vadd.f32 %v1358, %v1514
      %1516 = vmatprep.mubr.bf16.mxu0 0
      %1517 = vmatmul.mubr.bf16.gmra.mrb[0].mxu0 %v1459
      %v1518 = vpop.f32.mrb[0].mxu0
      %v1519 = vadd.f32 %v1354, %v1518
      %v1520 = vpop.f32.mrb[0].mxu0
      %v1521 = vadd.f32 %v1358, %v1520
      %v1522 = vpop.f32.mrb[0].mxu0
      %v1523 = vadd.f32 %v1354, %v1522
      %v1524 = vpop.f32.mrb[0].mxu0
      %v1525 = vadd.f32 %v1358, %v1524
      %1526 = vmatprep.mubr.bf16.mxu0 0
      %1527 = vmatmul.mubr.bf16.gmra.mrb[0].mxu0 %v1462
      %v1528 = vpop.f32.mrb[0].mxu0
      %v1529 = vadd.f32 %v1354, %v1528
      %v1530 = vpop.f32.mrb[0].mxu0
      %v1531 = vadd.f32 %v1358, %v1530
      %v1532 = vpop.f32.mrb[0].mxu0
      %v1533 = vadd.f32 %v1354, %v1532
      %v1534 = vpop.f32.mrb[0].mxu0
      %v1535 = vadd.f32 %v1358, %v1534
      %1536 = vdwg.mxu0
      %1537 = vmatprep.subr.bf16.mxu0 %v1422
      %1538 = vmatpush1.bf16.msra.mxu0 %v1421
      %1539 = vmatprep.subr.bf16.mxu0 %v1426
      %1540 = vmatpush1.bf16.msra.mxu0 %v1425
      %1541 = vmatprep.subr.bf16.mxu0 %v1430
      %1542 = vmatpush1.bf16.msra.mxu0 %v1429
      %1543 = vmatprep.subr.bf16.mxu0 %v1434
      %1544 = vmatpush1.bf16.msra.mxu0 %v1433
      %1545 = vmatprep.subr.bf16.mxu0 0
      %1546 = vmatpush1.bf16.msra.mxu0 0
      %1547 = vmatprep.subr.bf16.mxu0 0
      %1548 = vmatpush1.bf16.msra.mxu0 0
      %1549 = vmatprep.subr.bf16.mxu0 0
      %1550 = vmatpush1.bf16.msra.mxu0 0
      %1551 = vmatprep.subr.bf16.mxu0 0
      %1552 = vmatpush1.bf16.msra.mxu0 0
      %1553 = vmatprep.subr.bf16.mxu0 0
      %1554 = vmatpush1.bf16.msra.mxu0 0
      %1555 = vmatprep.subr.bf16.mxu0 0
      %1556 = vmatpush1.bf16.msra.mxu0 0
      %1557 = vmatprep.subr.bf16.mxu0 0
      %1558 = vmatpush1.bf16.msra.mxu0 0
      %1559 = vmatprep.subr.bf16.mxu0 0
      %1560 = vmatpush1.bf16.msra.mxu0 0
      %1561 = vmatprep.subr.bf16.mxu0 0
      %1562 = vmatpush1.bf16.msra.mxu0 0
      %1563 = vmatprep.subr.bf16.mxu0 0
      %1564 = vmatpush1.bf16.msra.mxu0 0
      %1565 = vmatprep.subr.bf16.mxu0 0
      %1566 = vmatpush1.bf16.msra.mxu0 0
      %1567 = vmatprep.subr.bf16.mxu0 0
      %1568 = vmatpush1.bf16.msra.mxu0 0
      %1569 = vmatprep.mubr.bf16.mxu0 0
      %1570 = vmatmul.mubr.bf16.gmra.mrb[0].mxu0 %v1453
      %v1571 = vpop.f32.mrb[0].mxu0
      %v1572 = vadd.f32 %v1362, %v1571
      %v1573 = vpop.f32.mrb[0].mxu0
      %v1574 = vadd.f32 %v1366, %v1573
      %v1575 = vpop.f32.mrb[0].mxu0
      %v1576 = vadd.f32 %v1362, %v1575
      %v1577 = vpop.f32.mrb[0].mxu0
      %v1578 = vadd.f32 %v1366, %v1577
      %1579 = vmatprep.mubr.bf16.mxu0 0
      %1580 = vmatmul.mubr.bf16.gmra.mrb[0].mxu0 %v1456
      %v1581 = vpop.f32.mrb[0].mxu0
      %v1582 = vadd.f32 %v1362, %v1581
      %v1583 = vpop.f32.mrb[0].mxu0
      %v1584 = vadd.f32 %v1366, %v1583
      %v1585 = vpop.f32.mrb[0].mxu0
      %v1586 = vadd.f32 %v1362, %v1585
      %v1587 = vpop.f32.mrb[0].mxu0
      %v1588 = vadd.f32 %v1366, %v1587
      %1589 = vmatprep.mubr.bf16.mxu0 0
      %1590 = vmatmul.mubr.bf16.gmra.mrb[0].mxu0 %v1459
      %v1591 = vpop.f32.mrb[0].mxu0
      %v1592 = vadd.f32 %v1362, %v1591
      %v1593 = vpop.f32.mrb[0].mxu0
      %v1594 = vadd.f32 %v1366, %v1593
      %v1595 = vpop.f32.mrb[0].mxu0
      %v1596 = vadd.f32 %v1362, %v1595
      %v1597 = vpop.f32.mrb[0].mxu0
      %v1598 = vadd.f32 %v1366, %v1597
      %1599 = vmatprep.mubr.bf16.mxu0 0
      %1600 = vmatmul.mubr.bf16.gmra.mrb[0].mxu0 %v1462
      %v1601 = vpop.f32.mrb[0].mxu0
      %v1602 = vadd.f32 %v1362, %v1601
      %v1603 = vpop.f32.mrb[0].mxu0
      %v1604 = vadd.f32 %v1366, %v1603
      %v1605 = vpop.f32.mrb[0].mxu0
      %v1606 = vadd.f32 %v1362, %v1605
      %v1607 = vpop.f32.mrb[0].mxu0
      %v1608 = vadd.f32 %v1366, %v1607
      %1609 = vdwg.mxu0
      %v1610 = vmax.f32 %v1499, 0.0
      %v1611 = vmax.f32 %v1501, 0.0
      %v1612 = vmax.f32 %v1572, 0.0
      %v1613 = vmax.f32 %v1574, 0.0
      %v1614 = vmax.f32 %v1503, 0.0
      %v1615 = vmax.f32 %v1505, 0.0
      %v1616 = vmax.f32 %v1576, 0.0
      %v1617 = vmax.f32 %v1578, 0.0
      %v1618 = vmax.f32 %v1509, 0.0
      %v1619 = vmax.f32 %v1511, 0.0
      %v1620 = vmax.f32 %v1582, 0.0
      %v1621 = vmax.f32 %v1584, 0.0
      %v1622 = vmax.f32 %v1513, 0.0
      %v1623 = vmax.f32 %v1515, 0.0
      %v1624 = vmax.f32 %v1586, 0.0
      %v1625 = vmax.f32 %v1588, 0.0
      %v1626 = vmax.f32 %v1519, 0.0
      %v1627 = vmax.f32 %v1521, 0.0
      %v1628 = vmax.f32 %v1592, 0.0
      %v1629 = vmax.f32 %v1594, 0.0
      %v1630 = vmax.f32 %v1523, 0.0
      %v1631 = vmax.f32 %v1525, 0.0
      %v1632 = vmax.f32 %v1596, 0.0
      %v1633 = vmax.f32 %v1598, 0.0
      %v1634 = vmax.f32 %v1529, 0.0
      %v1635 = vmax.f32 %v1531, 0.0
      %v1636 = vmax.f32 %v1602, 0.0
      %v1637 = vmax.f32 %v1604, 0.0
      %v1638 = vmax.f32 %v1533, 0.0
      %v1639 = vmax.f32 %v1535, 0.0
      %v1640 = vmax.f32 %v1606, 0.0
      %v1641 = vmax.f32 %v1608, 0.0
      %v1642 = vpack.c.bf16 %v1614, %v1610
      %v1643 = vpack.c.bf16 %v1615, %v1611
      %v1644 = vpack.c.bf16 %v1616, %v1612
      %v1645 = vpack.c.bf16 %v1617, %v1613
      %v1646 = vpack.c.bf16 %v1622, %v1618
      %v1647 = vpack.c.bf16 %v1623, %v1619
      %v1648 = vpack.c.bf16 %v1624, %v1620
      %v1649 = vpack.c.bf16 %v1625, %v1621
      %v1650 = vpack.c.bf16 %v1630, %v1626
      %v1651 = vpack.c.bf16 %v1631, %v1627
      %v1652 = vpack.c.bf16 %v1632, %v1628
      %v1653 = vpack.c.bf16 %v1633, %v1629
      %v1654 = vpack.c.bf16 %v1638, %v1634
      %v1655 = vpack.c.bf16 %v1639, %v1635
      %v1656 = vpack.c.bf16 %v1640, %v1636
      %v1657 = vpack.c.bf16 %v1641, %v1637
      %v1658 = vld [vmem:[%s4] sm:$0xf]
      %v1659 = vld [vmem:[%s4 + $0x4] sm:$0xf]
      %v1660 = vld [vmem:[%s4 + $0x8] sm:$0xf]
      %v1661 = vld [vmem:[%s4 + $0xc] sm:$0xf]
      %v1662 = vld [vmem:[%s4 + $0x10] sm:$0xf]
      %v1663 = vld [vmem:[%s4 + $0x14] sm:$0xf]
      %v1664 = vld [vmem:[%s4 + $0x18] sm:$0xf]
      %v1665 = vld [vmem:[%s4 + $0x1c] sm:$0xf]
      %v1666 = vld [vmem:[%s4 + $0x20] sm:$0xf]
      %v1667 = vld [vmem:[%s4 + $0x24] sm:$0xf]
      %v1668 = vld [vmem:[%s4 + $0x28] sm:$0xf]
      %v1669 = vld [vmem:[%s4 + $0x2c] sm:$0xf]
      %v1670 = vld [vmem:[%s4 + $0x30] sm:$0xf]
      %v1671 = vld [vmem:[%s4 + $0x34] sm:$0xf]
      %v1672 = vld [vmem:[%s4 + $0x38] sm:$0xf]
      %v1673 = vld [vmem:[%s4 + $0x3c] sm:$0xf]
      %v1674 = vld [vmem:[%s4 + $0x40] sm:$0xf]
      %v1675 = vld [vmem:[%s4 + $0x44] sm:$0xf]
      %v1676 = vld [vmem:[%s4 + $0x48] sm:$0xf]
      %v1677 = vld [vmem:[%s4 + $0x4c] sm:$0xf]
      %v1678 = vld [vmem:[%s4 + $0x50] sm:$0xf]
      %v1679 = vld [vmem:[%s4 + $0x54] sm:$0xf]
      %v1680 = vld [vmem:[%s4 + $0x58] sm:$0xf]
      %v1681 = vld [vmem:[%s4 + $0x5c] sm:$0xf]
      %v1682 = vld [vmem:[%s4 + $0x60] sm:$0xf]
      %v1683 = vld [vmem:[%s4 + $0x64] sm:$0xf]
      %v1684 = vld [vmem:[%s4 + $0x68] sm:$0xf]
      %v1685 = vld [vmem:[%s4 + $0x6c] sm:$0xf]
      %v1686 = vld [vmem:[%s4 + $0x70] sm:$0xf]
      %v1687 = vld [vmem:[%s4 + $0x74] sm:$0xf]
      %v1688 = vld [vmem:[%s4 + $0x78] sm:$0xf]
      %v1689 = vld [vmem:[%s4 + $0x7c] sm:$0xf]
      %v1690 = vld [vmem:[%s4 + $0x80] sm:$0xf]
      %v1691 = vld [vmem:[%s4 + $0x84] sm:$0xf]
      %v1692 = vld [vmem:[%s4 + $0x88] sm:$0xf]
      %v1693 = vld [vmem:[%s4 + $0x8c] sm:$0xf]
      %v1694 = vld [vmem:[%s4 + $0x90] sm:$0xf]
      %v1695 = vld [vmem:[%s4 + $0x94] sm:$0xf]
      %v1696 = vld [vmem:[%s4 + $0x98] sm:$0xf]
      %v1697 = vld [vmem:[%s4 + $0x9c] sm:$0xf]
      %v1698 = vld [vmem:[%s4 + $0xa0] sm:$0xf]
      %v1699 = vld [vmem:[%s4 + $0xa4] sm:$0xf]
      %v1700 = vld [vmem:[%s4 + $0xa8] sm:$0xf]
      %v1701 = vld [vmem:[%s4 + $0xac] sm:$0xf]
      %v1702 = vld [vmem:[%s4 + $0xb0] sm:$0xf]
      %v1703 = vld [vmem:[%s4 + $0xb4] sm:$0xf]
      %v1704 = vld [vmem:[%s4 + $0xb8] sm:$0xf]
      %v1705 = vld [vmem:[%s4 + $0xbc] sm:$0xf]
      %v1706 = vld [vmem:[%s4 + $0xc0] sm:$0xf]
      %v1707 = vld [vmem:[%s4 + $0xc4] sm:$0xf]
      %v1708 = vld [vmem:[%s4 + $0xc8] sm:$0xf]
      %v1709 = vld [vmem:[%s4 + $0xcc] sm:$0xf]
      %v1710 = vld [vmem:[%s4 + $0xd0] sm:$0xf]
      %v1711 = vld [vmem:[%s4 + $0xd4] sm:$0xf]
      %v1712 = vld [vmem:[%s4 + $0xd8] sm:$0xf]
      %v1713 = vld [vmem:[%s4 + $0xdc] sm:$0xf]
      %v1714 = vld [vmem:[%s4 + $0xe0] sm:$0xf]
      %v1715 = vld [vmem:[%s4 + $0xe4] sm:$0xf]
      %v1716 = vld [vmem:[%s4 + $0xe8] sm:$0xf]
      %v1717 = vld [vmem:[%s4 + $0xec] sm:$0xf]
      %v1718 = vld [vmem:[%s4 + $0xf0] sm:$0xf]
      %v1719 = vld [vmem:[%s4 + $0xf4] sm:$0xf]
      %v1720 = vld [vmem:[%s4 + $0xf8] sm:$0xf]
      %v1721 = vld [vmem:[%s4 + $0xfc] sm:$0xf]
      %v1722 = vld [vmem:[%s5 + $0x3] ss:$0 sm:$0xff]
      %v1787 = vunpack.c.l.b16 %v1658
      %v1788 = vunpack.c.l.b16 %v1659
      %v1789 = vunpack.c.l.b16 %v1660
      %v1790 = vunpack.c.l.b16 %v1661
      %v1791 = vunpack.c.l.b16 %v1662
      %v1792 = vunpack.c.l.b16 %v1663
      %v1793 = vunpack.c.l.b16 %v1664
      %v1794 = vunpack.c.l.b16 %v1665
      %v1795 = vunpack.c.l.b16 %v1666
      %v1796 = vunpack.c.l.b16 %v1667
      %v1797 = vunpack.c.l.b16 %v1668
      %v1798 = vunpack.c.l.b16 %v1669
      %v1799 = vunpack.c.l.b16 %v1670
      %v1800 = vunpack.c.l.b16 %v1671
      %v1801 = vunpack.c.l.b16 %v1672
      %v1802 = vunpack.c.l.b16 %v1673
      %v1803 = vunpack.c.l.b16 %v1674
      %v1804 = vunpack.c.l.b16 %v1675
      %v1805 = vunpack.c.l.b16 %v1676
      %v1806 = vunpack.c.l.b16 %v1677
      %v1807 = vunpack.c.l.b16 %v1678
      %v1808 = vunpack.c.l.b16 %v1679
      %v1809 = vunpack.c.l.b16 %v1680
      %v1810 = vunpack.c.l.b16 %v1681
      %v1811 = vunpack.c.l.b16 %v1682
      %v1812 = vunpack.c.l.b16 %v1683
      %v1813 = vunpack.c.l.b16 %v1684
      %v1814 = vunpack.c.l.b16 %v1685
      %v1815 = vunpack.c.l.b16 %v1686
      %v1816 = vunpack.c.l.b16 %v1687
      %v1817 = vunpack.c.l.b16 %v1688
      %v1818 = vunpack.c.l.b16 %v1689
      %v1819 = vunpack.c.l.b16 %v1690
      %v1820 = vunpack.c.l.b16 %v1691
      %v1821 = vunpack.c.l.b16 %v1692
      %v1822 = vunpack.c.l.b16 %v1693
      %v1823 = vunpack.c.l.b16 %v1694
      %v1824 = vunpack.c.l.b16 %v1695
      %v1825 = vunpack.c.l.b16 %v1696
      %v1826 = vunpack.c.l.b16 %v1697
      %v1827 = vunpack.c.l.b16 %v1698
      %v1828 = vunpack.c.l.b16 %v1699
      %v1829 = vunpack.c.l.b16 %v1700
      %v1830 = vunpack.c.l.b16 %v1701
      %v1831 = vunpack.c.l.b16 %v1702
      %v1832 = vunpack.c.l.b16 %v1703
      %v1833 = vunpack.c.l.b16 %v1704
      %v1834 = vunpack.c.l.b16 %v1705
      %v1835 = vunpack.c.l.b16 %v1706
      %v1836 = vunpack.c.l.b16 %v1707
      %v1837 = vunpack.c.l.b16 %v1708
      %v1838 = vunpack.c.l.b16 %v1709
      %v1839 = vunpack.c.l.b16 %v1710
      %v1840 = vunpack.c.l.b16 %v1711
      %v1841 = vunpack.c.l.b16 %v1712
      %v1842 = vunpack.c.l.b16 %v1713
      %v1843 = vunpack.c.l.b16 %v1714
      %v1844 = vunpack.c.l.b16 %v1715
      %v1845 = vunpack.c.l.b16 %v1716
      %v1846 = vunpack.c.l.b16 %v1717
      %v1847 = vunpack.c.l.b16 %v1718
      %v1848 = vunpack.c.l.b16 %v1719
      %v1849 = vunpack.c.l.b16 %v1720
      %v1850 = vunpack.c.l.b16 %v1721
      %v1851 = vpack.c.b16 %v1788, %v1787
      %v1852 = vpack.c.b16 %v1790, %v1789
      %v1853 = vpack.c.b16 %v1792, %v1791
      %v1854 = vpack.c.b16 %v1794, %v1793
      %v1855 = vpack.c.b16 %v1796, %v1795
      %v1856 = vpack.c.b16 %v1798, %v1797
      %v1857 = vpack.c.b16 %v1800, %v1799
      %v1858 = vpack.c.b16 %v1802, %v1801
      %v1859 = vpack.c.b16 %v1804, %v1803
      %v1860 = vpack.c.b16 %v1806, %v1805
      %v1861 = vpack.c.b16 %v1808, %v1807
      %v1862 = vpack.c.b16 %v1810, %v1809
      %v1863 = vpack.c.b16 %v1812, %v1811
      %v1864 = vpack.c.b16 %v1814, %v1813
      %v1865 = vpack.c.b16 %v1816, %v1815
      %v1866 = vpack.c.b16 %v1818, %v1817
      %v1867 = vpack.c.b16 %v1820, %v1819
      %v1868 = vpack.c.b16 %v1822, %v1821
      %v1869 = vpack.c.b16 %v1824, %v1823
      %v1870 = vpack.c.b16 %v1826, %v1825
      %v1871 = vpack.c.b16 %v1828, %v1827
      %v1872 = vpack.c.b16 %v1830, %v1829
      %v1873 = vpack.c.b16 %v1832, %v1831
      %v1874 = vpack.c.b16 %v1834, %v1833
      %v1875 = vpack.c.b16 %v1836, %v1835
      %v1876 = vpack.c.b16 %v1838, %v1837
      %v1877 = vpack.c.b16 %v1840, %v1839
      %v1878 = vpack.c.b16 %v1842, %v1841
      %v1879 = vpack.c.b16 %v1844, %v1843
      %v1880 = vpack.c.b16 %v1846, %v1845
      %v1881 = vpack.c.b16 %v1848, %v1847
      %v1882 = vpack.c.b16 %v1850, %v1849
      %1915 = vmatprep.subr.bf16.mxu0 0
      %1916 = vmatpush1.bf16.msra.mxu0 %v1851
      %1917 = vmatprep.subr.bf16.mxu0 0
      %1918 = vmatpush1.bf16.msra.mxu0 %v1852
      %1919 = vmatprep.subr.bf16.mxu0 0
      %1920 = vmatpush1.bf16.msra.mxu0 %v1853
      %1921 = vmatprep.subr.bf16.mxu0 0
      %1922 = vmatpush1.bf16.msra.mxu0 %v1854
      %1923 = vmatprep.subr.bf16.mxu0 0
      %1924 = vmatpush1.bf16.msra.mxu0 %v1855
      %1925 = vmatprep.subr.bf16.mxu0 0
      %1926 = vmatpush1.bf16.msra.mxu0 %v1856
      %1927 = vmatprep.subr.bf16.mxu0 0
      %1928 = vmatpush1.bf16.msra.mxu0 %v1857
      %1929 = vmatprep.subr.bf16.mxu0 0
      %1930 = vmatpush1.bf16.msra.mxu0 %v1858
      %1931 = vmatprep.subr.bf16.mxu0 0
      %1932 = vmatpush1.bf16.msra.mxu0 %v1859
      %1933 = vmatprep.subr.bf16.mxu0 0
      %1934 = vmatpush1.bf16.msra.mxu0 %v1860
      %1935 = vmatprep.subr.bf16.mxu0 0
      %1936 = vmatpush1.bf16.msra.mxu0 %v1861
      %1937 = vmatprep.subr.bf16.mxu0 0
      %1938 = vmatpush1.bf16.msra.mxu0 %v1862
      %1939 = vmatprep.subr.bf16.mxu0 0
      %1940 = vmatpush1.bf16.msra.mxu0 %v1863
      %1941 = vmatprep.subr.bf16.mxu0 0
      %1942 = vmatpush1.bf16.msra.mxu0 %v1864
      %1943 = vmatprep.subr.bf16.mxu0 0
      %1944 = vmatpush1.bf16.msra.mxu0 %v1865
      %1945 = vmatprep.subr.bf16.mxu0 0
      %1946 = vmatpush1.bf16.msra.mxu0 %v1866
      %1947 = vmatprep.mubr.bf16.mxu0 %v1643
      %1948 = vmatmul.mubr.bf16.gmra.mrb[0].mxu0 %v1642
      %v1949 = vpop.f32.mrb[0].mxu0
      %v1950 = vadd.f32 %v1722, %v1949
      %v1951 = vpop.f32.mrb[0].mxu0
      %v1952 = vpop.f32.mrb[0].mxu0
      %v1953 = vadd.f32 %v1722, %v1952
      %v1954 = vpop.f32.mrb[0].mxu0
      %1955 = vmatprep.mubr.bf16.mxu0 %v1647
      %1956 = vmatmul.mubr.bf16.gmra.mrb[0].mxu0 %v1646
      %v1957 = vpop.f32.mrb[0].mxu0
      %v1958 = vadd.f32 %v1722, %v1957
      %v1959 = vpop.f32.mrb[0].mxu0
      %v1960 = vpop.f32.mrb[0].mxu0
      %v1961 = vadd.f32 %v1722, %v1960
      %v1962 = vpop.f32.mrb[0].mxu0
      %1963 = vmatprep.mubr.bf16.mxu0 %v1651
      %1964 = vmatmul.mubr.bf16.gmra.mrb[0].mxu0 %v1650
      %v1965 = vpop.f32.mrb[0].mxu0
      %v1966 = vadd.f32 %v1722, %v1965
      %v1967 = vpop.f32.mrb[0].mxu0
      %v1968 = vpop.f32.mrb[0].mxu0
      %v1969 = vadd.f32 %v1722, %v1968
      %v1970 = vpop.f32.mrb[0].mxu0
      %1971 = vmatprep.mubr.bf16.mxu0 %v1655
      %1972 = vmatmul.mubr.bf16.gmra.mrb[0].mxu0 %v1654
      %v1973 = vpop.f32.mrb[0].mxu0
      %v1974 = vadd.f32 %v1722, %v1973
      %v1975 = vpop.f32.mrb[0].mxu0
      %v1976 = vpop.f32.mrb[0].mxu0
      %v1977 = vadd.f32 %v1722, %v1976
      %v1978 = vpop.f32.mrb[0].mxu0
      %1979 = vdwg.mxu0
      %1980 = vmatprep.subr.bf16.mxu0 0
      %1981 = vmatpush1.bf16.msra.mxu0 %v1867
      %1982 = vmatprep.subr.bf16.mxu0 0
      %1983 = vmatpush1.bf16.msra.mxu0 %v1868
      %1984 = vmatprep.subr.bf16.mxu0 0
      %1985 = vmatpush1.bf16.msra.mxu0 %v1869
      %1986 = vmatprep.subr.bf16.mxu0 0
      %1987 = vmatpush1.bf16.msra.mxu0 %v1870
      %1988 = vmatprep.subr.bf16.mxu0 0
      %1989 = vmatpush1.bf16.msra.mxu0 %v1871
      %1990 = vmatprep.subr.bf16.mxu0 0
      %1991 = vmatpush1.bf16.msra.mxu0 %v1872
      %1992 = vmatprep.subr.bf16.mxu0 0
      %1993 = vmatpush1.bf16.msra.mxu0 %v1873
      %1994 = vmatprep.subr.bf16.mxu0 0
      %1995 = vmatpush1.bf16.msra.mxu0 %v1874
      %1996 = vmatprep.subr.bf16.mxu0 0
      %1997 = vmatpush1.bf16.msra.mxu0 %v1875
      %1998 = vmatprep.subr.bf16.mxu0 0
      %1999 = vmatpush1.bf16.msra.mxu0 %v1876
      %2000 = vmatprep.subr.bf16.mxu0 0
      %2001 = vmatpush1.bf16.msra.mxu0 %v1877
      %2002 = vmatprep.subr.bf16.mxu0 0
      %2003 = vmatpush1.bf16.msra.mxu0 %v1878
      %2004 = vmatprep.subr.bf16.mxu0 0
      %2005 = vmatpush1.bf16.msra.mxu0 %v1879
      %2006 = vmatprep.subr.bf16.mxu0 0
      %2007 = vmatpush1.bf16.msra.mxu0 %v1880
      %2008 = vmatprep.subr.bf16.mxu0 0
      %2009 = vmatpush1.bf16.msra.mxu0 %v1881
      %2010 = vmatprep.subr.bf16.mxu0 0
      %2011 = vmatpush1.bf16.msra.mxu0 %v1882
      %2012 = vmatprep.mubr.bf16.mxu0 %v1645
      %2013 = vmatmul.mubr.bf16.gmra.mrb[0].mxu0 %v1644
      %v2014 = vpop.f32.mrb[0].mxu0
      %v2015 = vadd.f32 %v1950, %v2014
      %v2016 = vpop.f32.mrb[0].mxu0
      %v2017 = vpop.f32.mrb[0].mxu0
      %v2018 = vadd.f32 %v1953, %v2017
      %v2019 = vpop.f32.mrb[0].mxu0
      %2020 = vmatprep.mubr.bf16.mxu0 %v1649
      %2021 = vmatmul.mubr.bf16.gmra.mrb[0].mxu0 %v1648
      %v2022 = vpop.f32.mrb[0].mxu0
      %v2023 = vadd.f32 %v1958, %v2022
      %v2024 = vpop.f32.mrb[0].mxu0
      %v2025 = vpop.f32.mrb[0].mxu0
      %v2026 = vadd.f32 %v1961, %v2025
      %v2027 = vpop.f32.mrb[0].mxu0
      %2028 = vmatprep.mubr.bf16.mxu0 %v1653
      %2029 = vmatmul.mubr.bf16.gmra.mrb[0].mxu0 %v1652
      %v2030 = vpop.f32.mrb[0].mxu0
      %v2031 = vadd.f32 %v1966, %v2030
      %v2032 = vpop.f32.mrb[0].mxu0
      %v2033 = vpop.f32.mrb[0].mxu0
      %v2034 = vadd.f32 %v1969, %v2033
      %v2035 = vpop.f32.mrb[0].mxu0
      %2036 = vmatprep.mubr.bf16.mxu0 %v1657
      %2037 = vmatmul.mubr.bf16.gmra.mrb[0].mxu0 %v1656
      %v2038 = vpop.f32.mrb[0].mxu0
      %v2039 = vadd.f32 %v1974, %v2038
      %v2040 = vpop.f32.mrb[0].mxu0
      %v2041 = vpop.f32.mrb[0].mxu0
      %v2042 = vadd.f32 %v1977, %v2041
      %v2043 = vpop.f32.mrb[0].mxu0
      %2044 = vdwg.mxu0
      %vm2045 = vcmask 130048
      %2046 = vst.msk [vmem:[%s253] sm:$0xff] %vm2045, %v2015
      %2047 = vst.msk [vmem:[%s253 + $0x8] sm:$0xff] %vm2045, %v2018
      %2048 = vst.msk [vmem:[%s253 + $0x10] sm:$0xff] %vm2045, %v2023
      %2049 = vst.msk [vmem:[%s253 + $0x18] sm:$0xff] %vm2045, %v2026
      %2050 = vst.msk [vmem:[%s253 + $0x20] sm:$0xff] %vm2045, %v2031
      %2051 = vst.msk [vmem:[%s253 + $0x28] sm:$0xff] %vm2045, %v2034
      %2052 = vst.msk [vmem:[%s253 + $0x30] sm:$0xff] %vm2045, %v2039
      %2053 = vst.msk [vmem:[%s253 + $0x38] sm:$0xff] %vm2045, %v2042
      %s2054 = smul.u32 8, %s17
      %p2055 = scmp.lt.s32.totalorder %s2054, 15
      %s2056 = scalar_select %p2055, %s2054, 15
      %s2057 = smul.addr %s2056, 8
      %s2058 = scalar_lea.vmem %s6, %s2057
      // Predicated region
      $region45: #{auto_ggcnn_forward.1} parent=43 // pred_check
        %p2059 = pneg %p166
      $region46: #{auto_ggcnn_forward.1} parent=43 // pred_check_branch
        %2061 = sbr.rel (%p2059) target = $region48
      $region47: #{auto_ggcnn_forward.1} parent=43 // pred_region
        %s2062 = smul.u32 8, %s17
      $region48: #{auto_ggcnn_forward.1} parent=43 // pred_fallthru
        _
    $region44: #{auto_ggcnn_forward.1} parent=5 // pred_fallthru
      _
    %p2063 = scmp.le.s32.totalorder 2, %s12
    // Predicated region
    $region49: #{auto_ggcnn_forward.1} parent=5 // pred_check
      %p2064 = pneg %p2063
    $region50: #{auto_ggcnn_forward.1} parent=5 // pred_check_branch
      %2066 = sbr.rel (%p2064) target = $region52
    $region51: #{auto_ggcnn_forward.1} parent=5 // pred_region
      %s2067 = ssub.s32 %s12, 2
      // Predicated region
      $region53: #{auto_ggcnn_forward.1} parent=51 // pred_check
        %p2068 = pneg %p172
      $region54: #{auto_ggcnn_forward.1} parent=51 // pred_check_branch
        %2070 = sbr.rel (%p2068) target = $region56
      $region55: #{auto_ggcnn_forward.1} parent=51 // pred_region
        %s2071 = smul.u32 8, %s18
        %p2072 = scmp.lt.s32.totalorder %s2071, 15
        %s2073 = scalar_select %p2072, %s2071, 15
        %s2074 = smul.addr %s2073, 8
        %s2075 = scalar_lea.vmem %s6, %s2074
      $region56: #{auto_ggcnn_forward.1} parent=51 // pred_fallthru
        _
    $region52: #{auto_ggcnn_forward.1} parent=5 // pred_fallthru
      _
  $region6: #{auto_ggcnn_forward.1} parent=0 // loop_footer
    %s16 = sadd.s32 1, %s12
  $region7: #{auto_ggcnn_forward.1} parent=0 // loop_footer_branch
    %11 = sbr.rel target = $region3
  $region8: #{auto_ggcnn_forward.1} parent=0 // loop_exit
    _

</llo_original>
